<compile_context>
chip_gen: v6e
topology: v6e:2x2x1
jax: 0.10.0
libtpu: 0.0.40
codegen_flags: <defaults>
</compile_context>

<pallas_src>
import numpy as np
import jax
import jax.numpy as jnp
from jax import lax
from jax.experimental import pallas as pl
from jax.experimental.pallas import tpu as pltpu

# ---- module hyper-parameters (MetaNeXtBlock(dim=32)) ----
DIM = 32
GC = int(DIM * 0.125)          # 4  channels per depthwise branch
ID_CH = DIM - 3 * GC           # 20 identity channels
HIDDEN = int(4 * DIM)          # 128 MLP hidden channels
SQ_K = 3                       # square depthwise kernel
BAND_K = 11                    # band depthwise kernel
BN_EPS = 1e-5
LS_INIT = 1e-6
INV_SQRT2 = np.float32(0.7071067811865476)

HI_START = 16                  # sublane-aligned start of the "active" channel slice
HI_N = DIM - HI_START          # 16 = 4 identity + 3*GC depthwise-conv channels
HI_ID = ID_CH - HI_START       # 4 identity channels inside the hi slice
assert ID_CH >= HI_START, "all conv channels must sit inside the aligned hi slice"

# Cast MXU operands to bf16 (~3x matmul throughput on v6e/v7x). Off by default: exceeds the
# 5e-4 validation budget at gamma=1, and f32 keeps the module's exact forward semantics.
MXU_BF16 = False


def _gelu_exact(x):
    return 0.5 * x * (1.0 + lax.erf(x * INV_SQRT2))


def _mxu(x):
    return x.astype(jnp.bfloat16) if MXU_BF16 else x


def _tap_offsets():
    """Union of all depthwise tap offsets; (0, 0) first (identity + all centre taps)."""
    offs = [(0, 0)]
    for di in (-1, 0, 1):
        for dj in (-1, 0, 1):
            if (di, dj) != (0, 0):
                offs.append((di, dj))
    r = BAND_K // 2
    for dj in range(-r, r + 1):
        if (0, dj) not in offs:
            offs.append((0, dj))
    for di in range(-r, r + 1):
        if (di, 0) not in offs:
            offs.append((di, 0))
    return offs                                         # 25 taps


# ------------------------------- one-time weight folding --------------------------------
def fold_params(params, h, w):
    """Fold BN (eval-mode), branch biases and layer-scale into the kernel's constants.

    Call once per weight update -- NOT per forward call (keeps the jitted forward free of
    fold traffic, per the performance review)."""
    f32 = jnp.float32
    hw = h * w
    c = DIM
    bn_scale = params["bn_w"].reshape(c) * lax.rsqrt(params["bn_v"].reshape(c) + BN_EPS)
    bn_shift = params["bn_b"].reshape(c) - params["bn_m"].reshape(c) * bn_scale

    offs = _tap_offsets()
    half = BAND_K // 2
    sc_hi = bn_scale[HI_START:]                          # (16,)
    zeros4 = jnp.zeros((GC,), f32)
    lin = np.arange(hw)
    rr, cc = lin // w, lin % w
    wt_rows, mask_rows = [], []
    for di, dj in offs:
        seg_id = jnp.full((HI_ID,), 1.0 if (di, dj) == (0, 0) else 0.0, f32)
        seg_hw = params["w_hw"][di + 1, dj + 1] if (abs(di) <= 1 and abs(dj) <= 1) else zeros4
        seg_w = params["w_w"][dj + half] if (di == 0 and abs(dj) <= half) else zeros4
        seg_h = params["w_h"][di + half] if (dj == 0 and abs(di) <= half) else zeros4
        wt_rows.append(jnp.concatenate([seg_id, seg_hw, seg_w, seg_h]) * sc_hi)
        mask_rows.append(((rr + di >= 0) & (rr + di < h) &
                          (cc + dj >= 0) & (cc + dj < w)).astype(np.float32))
    w_tap = jnp.stack(wt_rows)[:, :, None]               # (T, 16, 1)  per-tap channel weights
    masks = jnp.asarray(np.stack(mask_rows))              # (T, HW)     per-tap zero-pad masks

    # fc1: BN shift + branch biases folded into the bias; BN scale of the 16 low identity
    # channels folded into the first 16 columns (those channels skip the tap stage entirely).
    add_c = jnp.concatenate([
        jnp.zeros((ID_CH,), f32),
        params["b_hw"].reshape(GC),
        params["b_w"].reshape(GC),
        params["b_h"].reshape(GC),
    ]) * bn_scale + bn_shift                               # (C,)
    w1 = params["fc1_w"].T                                 # (HIDDEN, C)
    w1lo = w1[:, :HI_START] * bn_scale[None, :HI_START]    # (HIDDEN, 16)
    w1hi = w1[:, HI_START:]                                # (HIDDEN, 16)
    b1 = (params["fc1_b"].reshape(HIDDEN) + add_c @ params["fc1_w"])[:, None]   # (HIDDEN, 1)
    # fc2: layer-scale gamma folded into weight and bias.
    ls = params["ls"].reshape(c)
    w2 = (params["fc2_w"] * ls[None, :]).T                 # (C, HIDDEN)
    b2 = (params["fc2_b"].reshape(c) * ls)[:, None]        # (C, 1)
    return {"w_tap": w_tap, "masks": masks, "w1lo": w1lo, "w1hi": w1hi,
            "b1": b1, "w2": w2, "b2": b2}


# -------------------------------------- the kernel ---------------------------------------
def _make_kernel(shifts, b_blk, hw):
    num_taps = len(shifts)

    def kernel(x_ref, wt_ref, m_ref, w1lo_ref, w1hi_ref, b1_ref, w2_ref, b2_ref,
               o_ref, acc_ref):
        # ---- token mixer (+ BN scale), vectorized over all images of the block ----------
        # Only the sublane-aligned 16-channel slice [16:32] takes part in the shift-MAC
        # taps; the 16 low identity channels are handled by fc1's pre-scaled columns.
        x_hi = x_ref[:, pl.ds(HI_START, HI_N), :]            # (b, 16, HW)
        x_hi = x_hi.reshape(b_blk * HI_N, hw)                # layout-compatible (16 % 8 == 0)
        wt = wt_ref[...]                                     # (T, 16, 1)
        if b_blk > 1:
            wt = jnp.tile(wt, (1, b_blk, 1))                 # (T, b*16, 1), tiny
        acc = x_hi * wt[0]                                   # centre tap (mask == 1)
        for t in range(1, num_taps):
            rolled = pltpu.roll(x_hi, shifts[t], 1)          # lane rotation on the XLU
            acc = acc + rolled * wt[t] * m_ref[pl.ds(t, 1), :]
        acc_ref[...] = acc.reshape(b_blk, HI_N, hw)

        # ---- ConvMlp (1x1 convs on the MXU) + layer-scale + residual, per image ---------
        w1lo = _mxu(w1lo_ref[...])                           # (HIDDEN, 16)
        w1hi = _mxu(w1hi_ref[...])                           # (HIDDEN, 16)
        w2 = _mxu(w2_ref[...])                               # (C, HIDDEN)
        b1 = jnp.broadcast_to(b1_ref[...], (HIDDEN, hw))     # lane broadcasts hoisted
        b2 = jnp.broadcast_to(b2_ref[...], (DIM, hw))        # out of the image loop

        def body(b, carry):
            xb = x_ref[b]                                    # (C, HW)
            h1 = (jnp.dot(w1lo, _mxu(xb[:HI_START, :]), preferred_element_type=jnp.float32)
                  + jnp.dot(w1hi, _mxu(acc_ref[b]), preferred_element_type=jnp.float32)
                  + b1)
            h1 = _gelu_exact(h1)
            h2 = jnp.dot(w2, _mxu(h1), preferred_element_type=jnp.float32) + b2
            o_ref[b] = xb + h2                               # layer-scale already in w2/b2
            return carry

        lax.fori_loop(0, b_blk, body, 0)

    return kernel


def _pick_block_n(n, hw):
    """Images per grid step: largest divisor of n that (a) keeps the (C, HW) x block inside
    a conservative VMEM budget (v7x: 32 MiB scoped, in/out double-buffered), and (b) prefers
    >= 4 grid steps so both v7x TensorCores get >= 2 pipelined steps, then >= 2, then 1."""
    block_bytes = DIM * hw * 4
    cap = max(1, min(32, n, (6 * 1024 * 1024) // max(1, block_bytes)))
    divisors = [b for b in range(1, cap + 1) if n % b == 0]
    for min_steps in (4, 2, 1):
        cands = [b for b in divisors if n // b >= min_steps]
        if cands:
            return max(cands)
    return 1


@jax.jit
def metanext_block(x_nchw, folded):
    """x_nchw: (N, C, H, W) float32, C == DIM; `folded` comes from fold_params(params, H, W)."""
    n, c, h, w = x_nchw.shape
    assert c == DIM
    hw = h * w
    offs = _tap_offsets()
    num_taps = len(offs)
    assert folded["masks"].shape == (num_taps, hw), "folded params built for a different H, W"
    shifts = tuple(int((-(di * w + dj)) % hw) for di, dj in offs)

    x = x_nchw.reshape(n, c, hw)                 # channels-first, lane-dense; free reshape
    b_blk = _pick_block_n(n, hw)
    grid = (n // b_blk,)

    def _const(shape):
        nd = len(shape)
        # Block index never changes -> single buffer (default 2 only doubles VMEM).
        return pl.BlockSpec(shape, lambda i, _nd=nd: (0,) * _nd,
                            pipeline_mode=pl.Buffered(1))

    out = pl.pallas_call(
        _make_kernel(shifts, b_blk, hw),
        out_shape=jax.ShapeDtypeStruct((n, c, hw), jnp.float32),
        grid_spec=pltpu.PrefetchScalarGridSpec(
            num_scalar_prefetch=0,
            grid=grid,
            in_specs=[
                pl.BlockSpec((b_blk, c, hw), lambda i: (i, 0, 0)),    # x (b_blk images/step)
                _const(folded["w_tap"].shape),                        # (T, 16, 1)
                _const(folded["masks"].shape),                        # (T, HW)
                _const(folded["w1lo"].shape),                         # (HIDDEN, 16)
                _const(folded["w1hi"].shape),                         # (HIDDEN, 16)
                _const(folded["b1"].shape),                           # (HIDDEN, 1)
                _const(folded["w2"].shape),                           # (C, HIDDEN)
                _const(folded["b2"].shape),                           # (C, 1)
            ],
            out_specs=pl.BlockSpec((b_blk, c, hw), lambda i: (i, 0, 0)),
            scratch_shapes=[pltpu.VMEM((b_blk, HI_N, hw), jnp.float32)],
        ),
        compiler_params=pltpu.CompilerParams(dimension_semantics=("parallel",)),
    )(x, folded["w_tap"], folded["masks"], folded["w1lo"], folded["w1hi"],
      folded["b1"], folded["w2"], folded["b2"])
    return out.reshape(n, c, h, w)


# ---------------------------- pure-JAX reference (for verification) ----------------------------
def reference(x_nchw, p):
    x = x_nchw
    x_id = x[:, :ID_CH]
    x_hw = x[:, ID_CH:ID_CH + GC]
    x_w = x[:, ID_CH + GC:ID_CH + 2 * GC]
    x_h = x[:, ID_CH + 2 * GC:]

    def dw(inp, w_hwio, b, pad):
        out = lax.conv_general_dilated(
            inp, w_hwio, window_strides=(1, 1), padding=pad,
            dimension_numbers=("NCHW", "HWIO", "NCHW"), feature_group_count=GC)
        return out + b.reshape(1, GC, 1, 1)

    y_hw = dw(x_hw, p["w_hw"].reshape(SQ_K, SQ_K, 1, GC), p["b_hw"], [(1, 1), (1, 1)])
    y_w = dw(x_w, p["w_w"].reshape(1, BAND_K, 1, GC), p["b_w"], [(0, 0), (5, 5)])
    y_h = dw(x_h, p["w_h"].reshape(BAND_K, 1, 1, GC), p["b_h"], [(5, 5), (0, 0)])
    mixed = jnp.concatenate([x_id, y_hw, y_w, y_h], axis=1)

    scale = p["bn_w"].reshape(-1) * lax.rsqrt(p["bn_v"].reshape(-1) + BN_EPS)
    shift = p["bn_b"].reshape(-1) - p["bn_m"].reshape(-1) * scale
    y = mixed * scale.reshape(1, -1, 1, 1) + shift.reshape(1, -1, 1, 1)

    h1 = jnp.einsum("nchw,cd->ndhw", y, p["fc1_w"]) + p["fc1_b"].reshape(1, -1, 1, 1)
    h1 = _gelu_exact(h1)
    h2 = jnp.einsum("ndhw,dc->nchw", h1, p["fc2_w"]) + p["fc2_b"].reshape(1, -1, 1, 1)
    return x + h2 * p["ls"].reshape(1, -1, 1, 1)


def make_params(key):
    ks = jax.random.split(key, 16)
    f32 = jnp.float32
    return {
        "w_hw": jax.random.normal(ks[0], (SQ_K, SQ_K, GC), f32) * 0.2,
        "b_hw": jax.random.normal(ks[1], (1, GC), f32) * 0.05,
        "w_w": jax.random.normal(ks[2], (BAND_K, GC), f32) * 0.2,
        "b_w": jax.random.normal(ks[3], (1, GC), f32) * 0.05,
        "w_h": jax.random.normal(ks[4], (BAND_K, GC), f32) * 0.2,
        "b_h": jax.random.normal(ks[5], (1, GC), f32) * 0.05,
        "bn_w": 1.0 + 0.1 * jax.random.normal(ks[6], (1, DIM), f32),
        "bn_b": 0.1 * jax.random.normal(ks[7], (1, DIM), f32),
        "bn_m": 0.1 * jax.random.normal(ks[8], (1, DIM), f32),
        "bn_v": jax.random.uniform(ks[9], (1, DIM), f32, minval=0.5, maxval=1.5),
        "fc1_w": jax.random.normal(ks[10], (DIM, HIDDEN), f32) * (1.0 / np.sqrt(DIM)),
        "fc1_b": jax.random.normal(ks[11], (1, HIDDEN), f32) * 0.05,
        "fc2_w": jax.random.normal(ks[12], (HIDDEN, DIM), f32) * (1.0 / np.sqrt(HIDDEN)),
        "fc2_b": jax.random.normal(ks[13], (1, DIM), f32) * 0.05,
        "ls": jnp.full((1, DIM), LS_INIT, f32),      # layer-scale init value 1e-6
    }


if __name__ == "__main__":
    key = jax.random.PRNGKey(0)
    k_x, k_p = jax.random.split(key)
    x = jax.random.normal(k_x, (2, DIM, 16, 16), jnp.float32)     # NCHW like PyTorch
    params = make_params(k_p)

    # One-time fold (per weight update), then the jitted forward.
    folded = fold_params(params, 16, 16)
    out = metanext_block(x, folded)
    jax.block_until_ready(out)
    ref = reference(x, params)
    assert out.shape == x.shape
    assert jnp.allclose(out, ref, atol=1e-5, rtol=1e-5), "mismatch vs reference (ls=1e-6)"

    # Stronger numerical check of the mixer/BN/MLP path: same kernel, gamma = 1 so the
    # non-residual branch is not vanishingly small.
    params_ck = dict(params, ls=jnp.ones((1, DIM), jnp.float32))
    folded_ck = fold_params(params_ck, 16, 16)
    out_ck = metanext_block(x, folded_ck)
    jax.block_until_ready(out_ck)
    ref_ck = reference(x, params_ck)
    tol = 2e-2 if MXU_BF16 else 5e-4
    assert jnp.allclose(out_ck, ref_ck, atol=tol, rtol=tol), "mismatch vs reference (ls=1)"

    print("KERNEL_OK")
</pallas_src>

<mosaic_0001>
module attributes {stable_mosaic.version = 11 : i64} {
  func.func @kernel(%arg0: i32, %arg1: memref<1x32x256xf32, #tpu.memory_space<vmem>>, %arg2: memref<25x16x1xf32, #tpu.memory_space<vmem>>, %arg3: memref<25x256xf32, #tpu.memory_space<vmem>>, %arg4: memref<128x16xf32, #tpu.memory_space<vmem>>, %arg5: memref<128x16xf32, #tpu.memory_space<vmem>>, %arg6: memref<128x1xf32, #tpu.memory_space<vmem>>, %arg7: memref<32x128xf32, #tpu.memory_space<vmem>>, %arg8: memref<32x1xf32, #tpu.memory_space<vmem>>, %arg9: memref<1x32x256xf32, #tpu.memory_space<vmem>>, %arg10: memref<1x16x256xf32, #tpu.memory_space<vmem>>) attributes {dimension_semantics = [#tpu.dimension_semantics<parallel>], iteration_bounds = array<i64: 2>, scalar_prefetch = 0 : i64, scratch_operands = 1 : i64, tpu.core_type = #tpu.core_type<tc>, window_params = [{transform_indices = @transform_0, window_bounds = array<i64: 1, 32, 256>}, {pipeline_mode = #tpu.pipeline_mode<synchronous>, transform_indices = @transform_1, window_bounds = array<i64: 25, 16, 1>}, {pipeline_mode = #tpu.pipeline_mode<synchronous>, transform_indices = @transform_2, window_bounds = array<i64: 25, 256>}, {pipeline_mode = #tpu.pipeline_mode<synchronous>, transform_indices = @transform_3, window_bounds = array<i64: 128, 16>}, {pipeline_mode = #tpu.pipeline_mode<synchronous>, transform_indices = @transform_4, window_bounds = array<i64: 128, 16>}, {pipeline_mode = #tpu.pipeline_mode<synchronous>, transform_indices = @transform_5, window_bounds = array<i64: 128, 1>}, {pipeline_mode = #tpu.pipeline_mode<synchronous>, transform_indices = @transform_6, window_bounds = array<i64: 32, 128>}, {pipeline_mode = #tpu.pipeline_mode<synchronous>, transform_indices = @transform_7, window_bounds = array<i64: 32, 1>}, {transform_indices = @transform_8, window_bounds = array<i64: 1, 32, 256>}]} {
    %c0 = arith.constant 0 : index
    %c16 = arith.constant 16 : index
    %c0_0 = arith.constant 0 : index
    %0 = vector.load %arg1[%c0, %c16, %c0_0] : memref<1x32x256xf32, #tpu.memory_space<vmem>>, vector<1x16x256xf32>
    %1 = vector.shape_cast %0 : vector<1x16x256xf32> to vector<16x256xf32>
    %c0_1 = arith.constant 0 : index
    %c0_2 = arith.constant 0 : index
    %c0_3 = arith.constant 0 : index
    %2 = vector.load %arg2[%c0_1, %c0_2, %c0_3] : memref<25x16x1xf32, #tpu.memory_space<vmem>>, vector<25x16x1xf32>
    %3 = vector.extract_strided_slice %2 {offsets = [0, 0, 0], sizes = [1, 16, 1], strides = [1, 1, 1]} : vector<25x16x1xf32> to vector<1x16x1xf32>
    %4 = vector.shape_cast %3 : vector<1x16x1xf32> to vector<16x1xf32>
    %5 = vector.broadcast %4 : vector<16x1xf32> to vector<16x256xf32>
    %6 = arith.mulf %1, %5 : vector<16x256xf32>
    %c17_i32 = arith.constant 17 : i32
    %7 = tpu.dynamic_rotate %1 by %c17_i32 dim 1 : vector<16x256xf32>, i32 -> vector<16x256xf32>
    %8 = vector.extract_strided_slice %2 {offsets = [1, 0, 0], sizes = [1, 16, 1], strides = [1, 1, 1]} : vector<25x16x1xf32> to vector<1x16x1xf32>
    %9 = vector.shape_cast %8 : vector<1x16x1xf32> to vector<16x1xf32>
    %10 = vector.broadcast %9 : vector<16x1xf32> to vector<16x256xf32>
    %11 = arith.mulf %7, %10 : vector<16x256xf32>
    %c1 = arith.constant 1 : index
    %c0_4 = arith.constant 0 : index
    %12 = vector.load %arg3[%c1, %c0_4] : memref<25x256xf32, #tpu.memory_space<vmem>>, vector<1x256xf32>
    %13 = vector.broadcast %12 : vector<1x256xf32> to vector<16x256xf32>
    %14 = arith.mulf %11, %13 : vector<16x256xf32>
    %15 = arith.addf %6, %14 : vector<16x256xf32>
    %c16_i32 = arith.constant 16 : i32
    %16 = tpu.dynamic_rotate %1 by %c16_i32 dim 1 : vector<16x256xf32>, i32 -> vector<16x256xf32>
    %17 = vector.extract_strided_slice %2 {offsets = [2, 0, 0], sizes = [1, 16, 1], strides = [1, 1, 1]} : vector<25x16x1xf32> to vector<1x16x1xf32>
    %18 = vector.shape_cast %17 : vector<1x16x1xf32> to vector<16x1xf32>
    %19 = vector.broadcast %18 : vector<16x1xf32> to vector<16x256xf32>
    %20 = arith.mulf %16, %19 : vector<16x256xf32>
    %c2 = arith.constant 2 : index
    %c0_5 = arith.constant 0 : index
    %21 = vector.load %arg3[%c2, %c0_5] : memref<25x256xf32, #tpu.memory_space<vmem>>, vector<1x256xf32>
    %22 = vector.broadcast %21 : vector<1x256xf32> to vector<16x256xf32>
    %23 = arith.mulf %20, %22 : vector<16x256xf32>
    %24 = arith.addf %15, %23 : vector<16x256xf32>
    %c15_i32 = arith.constant 15 : i32
    %25 = tpu.dynamic_rotate %1 by %c15_i32 dim 1 : vector<16x256xf32>, i32 -> vector<16x256xf32>
    %26 = vector.extract_strided_slice %2 {offsets = [3, 0, 0], sizes = [1, 16, 1], strides = [1, 1, 1]} : vector<25x16x1xf32> to vector<1x16x1xf32>
    %27 = vector.shape_cast %26 : vector<1x16x1xf32> to vector<16x1xf32>
    %28 = vector.broadcast %27 : vector<16x1xf32> to vector<16x256xf32>
    %29 = arith.mulf %25, %28 : vector<16x256xf32>
    %c3 = arith.constant 3 : index
    %c0_6 = arith.constant 0 : index
    %30 = vector.load %arg3[%c3, %c0_6] : memref<25x256xf32, #tpu.memory_space<vmem>>, vector<1x256xf32>
    %31 = vector.broadcast %30 : vector<1x256xf32> to vector<16x256xf32>
    %32 = arith.mulf %29, %31 : vector<16x256xf32>
    %33 = arith.addf %24, %32 : vector<16x256xf32>
    %c1_i32 = arith.constant 1 : i32
    %34 = tpu.dynamic_rotate %1 by %c1_i32 dim 1 : vector<16x256xf32>, i32 -> vector<16x256xf32>
    %35 = vector.extract_strided_slice %2 {offsets = [4, 0, 0], sizes = [1, 16, 1], strides = [1, 1, 1]} : vector<25x16x1xf32> to vector<1x16x1xf32>
    %36 = vector.shape_cast %35 : vector<1x16x1xf32> to vector<16x1xf32>
    %37 = vector.broadcast %36 : vector<16x1xf32> to vector<16x256xf32>
    %38 = arith.mulf %34, %37 : vector<16x256xf32>
    %c4 = arith.constant 4 : index
    %c0_7 = arith.constant 0 : index
    %39 = vector.load %arg3[%c4, %c0_7] : memref<25x256xf32, #tpu.memory_space<vmem>>, vector<1x256xf32>
    %40 = vector.broadcast %39 : vector<1x256xf32> to vector<16x256xf32>
    %41 = arith.mulf %38, %40 : vector<16x256xf32>
    %42 = arith.addf %33, %41 : vector<16x256xf32>
    %c255_i32 = arith.constant 255 : i32
    %43 = tpu.dynamic_rotate %1 by %c255_i32 dim 1 : vector<16x256xf32>, i32 -> vector<16x256xf32>
    %44 = vector.extract_strided_slice %2 {offsets = [5, 0, 0], sizes = [1, 16, 1], strides = [1, 1, 1]} : vector<25x16x1xf32> to vector<1x16x1xf32>
    %45 = vector.shape_cast %44 : vector<1x16x1xf32> to vector<16x1xf32>
    %46 = vector.broadcast %45 : vector<16x1xf32> to vector<16x256xf32>
    %47 = arith.mulf %43, %46 : vector<16x256xf32>
    %c5 = arith.constant 5 : index
    %c0_8 = arith.constant 0 : index
    %48 = vector.load %arg3[%c5, %c0_8] : memref<25x256xf32, #tpu.memory_space<vmem>>, vector<1x256xf32>
    %49 = vector.broadcast %48 : vector<1x256xf32> to vector<16x256xf32>
    %50 = arith.mulf %47, %49 : vector<16x256xf32>
    %51 = arith.addf %42, %50 : vector<16x256xf32>
    %c241_i32 = arith.constant 241 : i32
    %52 = tpu.dynamic_rotate %1 by %c241_i32 dim 1 : vector<16x256xf32>, i32 -> vector<16x256xf32>
    %53 = vector.extract_strided_slice %2 {offsets = [6, 0, 0], sizes = [1, 16, 1], strides = [1, 1, 1]} : vector<25x16x1xf32> to vector<1x16x1xf32>
    %54 = vector.shape_cast %53 : vector<1x16x1xf32> to vector<16x1xf32>
    %55 = vector.broadcast %54 : vector<16x1xf32> to vector<16x256xf32>
    %56 = arith.mulf %52, %55 : vector<16x256xf32>
    %c6 = arith.constant 6 : index
    %c0_9 = arith.constant 0 : index
    %57 = vector.load %arg3[%c6, %c0_9] : memref<25x256xf32, #tpu.memory_space<vmem>>, vector<1x256xf32>
    %58 = vector.broadcast %57 : vector<1x256xf32> to vector<16x256xf32>
    %59 = arith.mulf %56, %58 : vector<16x256xf32>
    %60 = arith.addf %51, %59 : vector<16x256xf32>
    %c240_i32 = arith.constant 240 : i32
    %61 = tpu.dynamic_rotate %1 by %c240_i32 dim 1 : vector<16x256xf32>, i32 -> vector<16x256xf32>
    %62 = vector.extract_strided_slice %2 {offsets = [7, 0, 0], sizes = [1, 16, 1], strides = [1, 1, 1]} : vector<25x16x1xf32> to vector<1x16x1xf32>
    %63 = vector.shape_cast %62 : vector<1x16x1xf32> to vector<16x1xf32>
    %64 = vector.broadcast %63 : vector<16x1xf32> to vector<16x256xf32>
    %65 = arith.mulf %61, %64 : vector<16x256xf32>
    %c7 = arith.constant 7 : index
    %c0_10 = arith.constant 0 : index
    %66 = vector.load %arg3[%c7, %c0_10] : memref<25x256xf32, #tpu.memory_space<vmem>>, vector<1x256xf32>
    %67 = vector.broadcast %66 : vector<1x256xf32> to vector<16x256xf32>
    %68 = arith.mulf %65, %67 : vector<16x256xf32>
    %69 = arith.addf %60, %68 : vector<16x256xf32>
    %c239_i32 = arith.constant 239 : i32
    %70 = tpu.dynamic_rotate %1 by %c239_i32 dim 1 : vector<16x256xf32>, i32 -> vector<16x256xf32>
    %71 = vector.extract_strided_slice %2 {offsets = [8, 0, 0], sizes = [1, 16, 1], strides = [1, 1, 1]} : vector<25x16x1xf32> to vector<1x16x1xf32>
    %72 = vector.shape_cast %71 : vector<1x16x1xf32> to vector<16x1xf32>
    %73 = vector.broadcast %72 : vector<16x1xf32> to vector<16x256xf32>
    %74 = arith.mulf %70, %73 : vector<16x256xf32>
    %c8 = arith.constant 8 : index
    %c0_11 = arith.constant 0 : index
    %75 = vector.load %arg3[%c8, %c0_11] : memref<25x256xf32, #tpu.memory_space<vmem>>, vector<1x256xf32>
    %76 = vector.broadcast %75 : vector<1x256xf32> to vector<16x256xf32>
    %77 = arith.mulf %74, %76 : vector<16x256xf32>
    %78 = arith.addf %69, %77 : vector<16x256xf32>
    %c5_i32 = arith.constant 5 : i32
    %79 = tpu.dynamic_rotate %1 by %c5_i32 dim 1 : vector<16x256xf32>, i32 -> vector<16x256xf32>
    %80 = vector.extract_strided_slice %2 {offsets = [9, 0, 0], sizes = [1, 16, 1], strides = [1, 1, 1]} : vector<25x16x1xf32> to vector<1x16x1xf32>
    %81 = vector.shape_cast %80 : vector<1x16x1xf32> to vector<16x1xf32>
    %82 = vector.broadcast %81 : vector<16x1xf32> to vector<16x256xf32>
    %83 = arith.mulf %79, %82 : vector<16x256xf32>
    %c9 = arith.constant 9 : index
    %c0_12 = arith.constant 0 : index
    %84 = vector.load %arg3[%c9, %c0_12] : memref<25x256xf32, #tpu.memory_space<vmem>>, vector<1x256xf32>
    %85 = vector.broadcast %84 : vector<1x256xf32> to vector<16x256xf32>
    %86 = arith.mulf %83, %85 : vector<16x256xf32>
    %87 = arith.addf %78, %86 : vector<16x256xf32>
    %c4_i32 = arith.constant 4 : i32
    %88 = tpu.dynamic_rotate %1 by %c4_i32 dim 1 : vector<16x256xf32>, i32 -> vector<16x256xf32>
    %89 = vector.extract_strided_slice %2 {offsets = [10, 0, 0], sizes = [1, 16, 1], strides = [1, 1, 1]} : vector<25x16x1xf32> to vector<1x16x1xf32>
    %90 = vector.shape_cast %89 : vector<1x16x1xf32> to vector<16x1xf32>
    %91 = vector.broadcast %90 : vector<16x1xf32> to vector<16x256xf32>
    %92 = arith.mulf %88, %91 : vector<16x256xf32>
    %c10 = arith.constant 10 : index
    %c0_13 = arith.constant 0 : index
    %93 = vector.load %arg3[%c10, %c0_13] : memref<25x256xf32, #tpu.memory_space<vmem>>, vector<1x256xf32>
    %94 = vector.broadcast %93 : vector<1x256xf32> to vector<16x256xf32>
    %95 = arith.mulf %92, %94 : vector<16x256xf32>
    %96 = arith.addf %87, %95 : vector<16x256xf32>
    %c3_i32 = arith.constant 3 : i32
    %97 = tpu.dynamic_rotate %1 by %c3_i32 dim 1 : vector<16x256xf32>, i32 -> vector<16x256xf32>
    %98 = vector.extract_strided_slice %2 {offsets = [11, 0, 0], sizes = [1, 16, 1], strides = [1, 1, 1]} : vector<25x16x1xf32> to vector<1x16x1xf32>
    %99 = vector.shape_cast %98 : vector<1x16x1xf32> to vector<16x1xf32>
    %100 = vector.broadcast %99 : vector<16x1xf32> to vector<16x256xf32>
    %101 = arith.mulf %97, %100 : vector<16x256xf32>
    %c11 = arith.constant 11 : index
    %c0_14 = arith.constant 0 : index
    %102 = vector.load %arg3[%c11, %c0_14] : memref<25x256xf32, #tpu.memory_space<vmem>>, vector<1x256xf32>
    %103 = vector.broadcast %102 : vector<1x256xf32> to vector<16x256xf32>
    %104 = arith.mulf %101, %103 : vector<16x256xf32>
    %105 = arith.addf %96, %104 : vector<16x256xf32>
    %c2_i32 = arith.constant 2 : i32
    %106 = tpu.dynamic_rotate %1 by %c2_i32 dim 1 : vector<16x256xf32>, i32 -> vector<16x256xf32>
    %107 = vector.extract_strided_slice %2 {offsets = [12, 0, 0], sizes = [1, 16, 1], strides = [1, 1, 1]} : vector<25x16x1xf32> to vector<1x16x1xf32>
    %108 = vector.shape_cast %107 : vector<1x16x1xf32> to vector<16x1xf32>
    %109 = vector.broadcast %108 : vector<16x1xf32> to vector<16x256xf32>
    %110 = arith.mulf %106, %109 : vector<16x256xf32>
    %c12 = arith.constant 12 : index
    %c0_15 = arith.constant 0 : index
    %111 = vector.load %arg3[%c12, %c0_15] : memref<25x256xf32, #tpu.memory_space<vmem>>, vector<1x256xf32>
    %112 = vector.broadcast %111 : vector<1x256xf32> to vector<16x256xf32>
    %113 = arith.mulf %110, %112 : vector<16x256xf32>
    %114 = arith.addf %105, %113 : vector<16x256xf32>
    %c254_i32 = arith.constant 254 : i32
    %115 = tpu.dynamic_rotate %1 by %c254_i32 dim 1 : vector<16x256xf32>, i32 -> vector<16x256xf32>
    %116 = vector.extract_strided_slice %2 {offsets = [13, 0, 0], sizes = [1, 16, 1], strides = [1, 1, 1]} : vector<25x16x1xf32> to vector<1x16x1xf32>
    %117 = vector.shape_cast %116 : vector<1x16x1xf32> to vector<16x1xf32>
    %118 = vector.broadcast %117 : vector<16x1xf32> to vector<16x256xf32>
    %119 = arith.mulf %115, %118 : vector<16x256xf32>
    %c13 = arith.constant 13 : index
    %c0_16 = arith.constant 0 : index
    %120 = vector.load %arg3[%c13, %c0_16] : memref<25x256xf32, #tpu.memory_space<vmem>>, vector<1x256xf32>
    %121 = vector.broadcast %120 : vector<1x256xf32> to vector<16x256xf32>
    %122 = arith.mulf %119, %121 : vector<16x256xf32>
    %123 = arith.addf %114, %122 : vector<16x256xf32>
    %c253_i32 = arith.constant 253 : i32
    %124 = tpu.dynamic_rotate %1 by %c253_i32 dim 1 : vector<16x256xf32>, i32 -> vector<16x256xf32>
    %125 = vector.extract_strided_slice %2 {offsets = [14, 0, 0], sizes = [1, 16, 1], strides = [1, 1, 1]} : vector<25x16x1xf32> to vector<1x16x1xf32>
    %126 = vector.shape_cast %125 : vector<1x16x1xf32> to vector<16x1xf32>
    %127 = vector.broadcast %126 : vector<16x1xf32> to vector<16x256xf32>
    %128 = arith.mulf %124, %127 : vector<16x256xf32>
    %c14 = arith.constant 14 : index
    %c0_17 = arith.constant 0 : index
    %129 = vector.load %arg3[%c14, %c0_17] : memref<25x256xf32, #tpu.memory_space<vmem>>, vector<1x256xf32>
    %130 = vector.broadcast %129 : vector<1x256xf32> to vector<16x256xf32>
    %131 = arith.mulf %128, %130 : vector<16x256xf32>
    %132 = arith.addf %123, %131 : vector<16x256xf32>
    %c252_i32 = arith.constant 252 : i32
    %133 = tpu.dynamic_rotate %1 by %c252_i32 dim 1 : vector<16x256xf32>, i32 -> vector<16x256xf32>
    %134 = vector.extract_strided_slice %2 {offsets = [15, 0, 0], sizes = [1, 16, 1], strides = [1, 1, 1]} : vector<25x16x1xf32> to vector<1x16x1xf32>
    %135 = vector.shape_cast %134 : vector<1x16x1xf32> to vector<16x1xf32>
    %136 = vector.broadcast %135 : vector<16x1xf32> to vector<16x256xf32>
    %137 = arith.mulf %133, %136 : vector<16x256xf32>
    %c15 = arith.constant 15 : index
    %c0_18 = arith.constant 0 : index
    %138 = vector.load %arg3[%c15, %c0_18] : memref<25x256xf32, #tpu.memory_space<vmem>>, vector<1x256xf32>
    %139 = vector.broadcast %138 : vector<1x256xf32> to vector<16x256xf32>
    %140 = arith.mulf %137, %139 : vector<16x256xf32>
    %141 = arith.addf %132, %140 : vector<16x256xf32>
    %c251_i32 = arith.constant 251 : i32
    %142 = tpu.dynamic_rotate %1 by %c251_i32 dim 1 : vector<16x256xf32>, i32 -> vector<16x256xf32>
    %143 = vector.extract_strided_slice %2 {offsets = [16, 0, 0], sizes = [1, 16, 1], strides = [1, 1, 1]} : vector<25x16x1xf32> to vector<1x16x1xf32>
    %144 = vector.shape_cast %143 : vector<1x16x1xf32> to vector<16x1xf32>
    %145 = vector.broadcast %144 : vector<16x1xf32> to vector<16x256xf32>
    %146 = arith.mulf %142, %145 : vector<16x256xf32>
    %c16_19 = arith.constant 16 : index
    %c0_20 = arith.constant 0 : index
    %147 = vector.load %arg3[%c16_19, %c0_20] : memref<25x256xf32, #tpu.memory_space<vmem>>, vector<1x256xf32>
    %148 = vector.broadcast %147 : vector<1x256xf32> to vector<16x256xf32>
    %149 = arith.mulf %146, %148 : vector<16x256xf32>
    %150 = arith.addf %141, %149 : vector<16x256xf32>
    %c80_i32 = arith.constant 80 : i32
    %151 = tpu.dynamic_rotate %1 by %c80_i32 dim 1 : vector<16x256xf32>, i32 -> vector<16x256xf32>
    %152 = vector.extract_strided_slice %2 {offsets = [17, 0, 0], sizes = [1, 16, 1], strides = [1, 1, 1]} : vector<25x16x1xf32> to vector<1x16x1xf32>
    %153 = vector.shape_cast %152 : vector<1x16x1xf32> to vector<16x1xf32>
    %154 = vector.broadcast %153 : vector<16x1xf32> to vector<16x256xf32>
    %155 = arith.mulf %151, %154 : vector<16x256xf32>
    %c17 = arith.constant 17 : index
    %c0_21 = arith.constant 0 : index
    %156 = vector.load %arg3[%c17, %c0_21] : memref<25x256xf32, #tpu.memory_space<vmem>>, vector<1x256xf32>
    %157 = vector.broadcast %156 : vector<1x256xf32> to vector<16x256xf32>
    %158 = arith.mulf %155, %157 : vector<16x256xf32>
    %159 = arith.addf %150, %158 : vector<16x256xf32>
    %c64_i32 = arith.constant 64 : i32
    %160 = tpu.dynamic_rotate %1 by %c64_i32 dim 1 : vector<16x256xf32>, i32 -> vector<16x256xf32>
    %161 = vector.extract_strided_slice %2 {offsets = [18, 0, 0], sizes = [1, 16, 1], strides = [1, 1, 1]} : vector<25x16x1xf32> to vector<1x16x1xf32>
    %162 = vector.shape_cast %161 : vector<1x16x1xf32> to vector<16x1xf32>
    %163 = vector.broadcast %162 : vector<16x1xf32> to vector<16x256xf32>
    %164 = arith.mulf %160, %163 : vector<16x256xf32>
    %c18 = arith.constant 18 : index
    %c0_22 = arith.constant 0 : index
    %165 = vector.load %arg3[%c18, %c0_22] : memref<25x256xf32, #tpu.memory_space<vmem>>, vector<1x256xf32>
    %166 = vector.broadcast %165 : vector<1x256xf32> to vector<16x256xf32>
    %167 = arith.mulf %164, %166 : vector<16x256xf32>
    %168 = arith.addf %159, %167 : vector<16x256xf32>
    %c48_i32 = arith.constant 48 : i32
    %169 = tpu.dynamic_rotate %1 by %c48_i32 dim 1 : vector<16x256xf32>, i32 -> vector<16x256xf32>
    %170 = vector.extract_strided_slice %2 {offsets = [19, 0, 0], sizes = [1, 16, 1], strides = [1, 1, 1]} : vector<25x16x1xf32> to vector<1x16x1xf32>
    %171 = vector.shape_cast %170 : vector<1x16x1xf32> to vector<16x1xf32>
    %172 = vector.broadcast %171 : vector<16x1xf32> to vector<16x256xf32>
    %173 = arith.mulf %169, %172 : vector<16x256xf32>
    %c19 = arith.constant 19 : index
    %c0_23 = arith.constant 0 : index
    %174 = vector.load %arg3[%c19, %c0_23] : memref<25x256xf32, #tpu.memory_space<vmem>>, vector<1x256xf32>
    %175 = vector.broadcast %174 : vector<1x256xf32> to vector<16x256xf32>
    %176 = arith.mulf %173, %175 : vector<16x256xf32>
    %177 = arith.addf %168, %176 : vector<16x256xf32>
    %c32_i32 = arith.constant 32 : i32
    %178 = tpu.dynamic_rotate %1 by %c32_i32 dim 1 : vector<16x256xf32>, i32 -> vector<16x256xf32>
    %179 = vector.extract_strided_slice %2 {offsets = [20, 0, 0], sizes = [1, 16, 1], strides = [1, 1, 1]} : vector<25x16x1xf32> to vector<1x16x1xf32>
    %180 = vector.shape_cast %179 : vector<1x16x1xf32> to vector<16x1xf32>
    %181 = vector.broadcast %180 : vector<16x1xf32> to vector<16x256xf32>
    %182 = arith.mulf %178, %181 : vector<16x256xf32>
    %c20 = arith.constant 20 : index
    %c0_24 = arith.constant 0 : index
    %183 = vector.load %arg3[%c20, %c0_24] : memref<25x256xf32, #tpu.memory_space<vmem>>, vector<1x256xf32>
    %184 = vector.broadcast %183 : vector<1x256xf32> to vector<16x256xf32>
    %185 = arith.mulf %182, %184 : vector<16x256xf32>
    %186 = arith.addf %177, %185 : vector<16x256xf32>
    %c224_i32 = arith.constant 224 : i32
    %187 = tpu.dynamic_rotate %1 by %c224_i32 dim 1 : vector<16x256xf32>, i32 -> vector<16x256xf32>
    %188 = vector.extract_strided_slice %2 {offsets = [21, 0, 0], sizes = [1, 16, 1], strides = [1, 1, 1]} : vector<25x16x1xf32> to vector<1x16x1xf32>
    %189 = vector.shape_cast %188 : vector<1x16x1xf32> to vector<16x1xf32>
    %190 = vector.broadcast %189 : vector<16x1xf32> to vector<16x256xf32>
    %191 = arith.mulf %187, %190 : vector<16x256xf32>
    %c21 = arith.constant 21 : index
    %c0_25 = arith.constant 0 : index
    %192 = vector.load %arg3[%c21, %c0_25] : memref<25x256xf32, #tpu.memory_space<vmem>>, vector<1x256xf32>
    %193 = vector.broadcast %192 : vector<1x256xf32> to vector<16x256xf32>
    %194 = arith.mulf %191, %193 : vector<16x256xf32>
    %195 = arith.addf %186, %194 : vector<16x256xf32>
    %c208_i32 = arith.constant 208 : i32
    %196 = tpu.dynamic_rotate %1 by %c208_i32 dim 1 : vector<16x256xf32>, i32 -> vector<16x256xf32>
    %197 = vector.extract_strided_slice %2 {offsets = [22, 0, 0], sizes = [1, 16, 1], strides = [1, 1, 1]} : vector<25x16x1xf32> to vector<1x16x1xf32>
    %198 = vector.shape_cast %197 : vector<1x16x1xf32> to vector<16x1xf32>
    %199 = vector.broadcast %198 : vector<16x1xf32> to vector<16x256xf32>
    %200 = arith.mulf %196, %199 : vector<16x256xf32>
    %c22 = arith.constant 22 : index
    %c0_26 = arith.constant 0 : index
    %201 = vector.load %arg3[%c22, %c0_26] : memref<25x256xf32, #tpu.memory_space<vmem>>, vector<1x256xf32>
    %202 = vector.broadcast %201 : vector<1x256xf32> to vector<16x256xf32>
    %203 = arith.mulf %200, %202 : vector<16x256xf32>
    %204 = arith.addf %195, %203 : vector<16x256xf32>
    %c192_i32 = arith.constant 192 : i32
    %205 = tpu.dynamic_rotate %1 by %c192_i32 dim 1 : vector<16x256xf32>, i32 -> vector<16x256xf32>
    %206 = vector.extract_strided_slice %2 {offsets = [23, 0, 0], sizes = [1, 16, 1], strides = [1, 1, 1]} : vector<25x16x1xf32> to vector<1x16x1xf32>
    %207 = vector.shape_cast %206 : vector<1x16x1xf32> to vector<16x1xf32>
    %208 = vector.broadcast %207 : vector<16x1xf32> to vector<16x256xf32>
    %209 = arith.mulf %205, %208 : vector<16x256xf32>
    %c23 = arith.constant 23 : index
    %c0_27 = arith.constant 0 : index
    %210 = vector.load %arg3[%c23, %c0_27] : memref<25x256xf32, #tpu.memory_space<vmem>>, vector<1x256xf32>
    %211 = vector.broadcast %210 : vector<1x256xf32> to vector<16x256xf32>
    %212 = arith.mulf %209, %211 : vector<16x256xf32>
    %213 = arith.addf %204, %212 : vector<16x256xf32>
    %c176_i32 = arith.constant 176 : i32
    %214 = tpu.dynamic_rotate %1 by %c176_i32 dim 1 : vector<16x256xf32>, i32 -> vector<16x256xf32>
    %215 = vector.extract_strided_slice %2 {offsets = [24, 0, 0], sizes = [1, 16, 1], strides = [1, 1, 1]} : vector<25x16x1xf32> to vector<1x16x1xf32>
    %216 = vector.shape_cast %215 : vector<1x16x1xf32> to vector<16x1xf32>
    %217 = vector.broadcast %216 : vector<16x1xf32> to vector<16x256xf32>
    %218 = arith.mulf %214, %217 : vector<16x256xf32>
    %c24 = arith.constant 24 : index
    %c0_28 = arith.constant 0 : index
    %219 = vector.load %arg3[%c24, %c0_28] : memref<25x256xf32, #tpu.memory_space<vmem>>, vector<1x256xf32>
    %220 = vector.broadcast %219 : vector<1x256xf32> to vector<16x256xf32>
    %221 = arith.mulf %218, %220 : vector<16x256xf32>
    %222 = arith.addf %213, %221 : vector<16x256xf32>
    %223 = vector.shape_cast %222 : vector<16x256xf32> to vector<1x16x256xf32>
    %c0_29 = arith.constant 0 : index
    %c0_30 = arith.constant 0 : index
    %c0_31 = arith.constant 0 : index
    %224 = vector.load %arg10[%c0_29, %c0_30, %c0_31] : memref<1x16x256xf32, #tpu.memory_space<vmem>>, vector<1x16x256xf32>
    tpu.vector_store %arg10[%c0_29, %c0_30, %c0_31], %223 {strides = array<i32>} : memref<1x16x256xf32, #tpu.memory_space<vmem>>, vector<1x16x256xf32>,
    %c0_32 = arith.constant 0 : index
    %c0_33 = arith.constant 0 : index
    %225 = vector.load %arg4[%c0_32, %c0_33] : memref<128x16xf32, #tpu.memory_space<vmem>>, vector<128x16xf32>
    %c0_34 = arith.constant 0 : index
    %c0_35 = arith.constant 0 : index
    %226 = vector.load %arg5[%c0_34, %c0_35] : memref<128x16xf32, #tpu.memory_space<vmem>>, vector<128x16xf32>
    %c0_36 = arith.constant 0 : index
    %c0_37 = arith.constant 0 : index
    %227 = vector.load %arg7[%c0_36, %c0_37] : memref<32x128xf32, #tpu.memory_space<vmem>>, vector<32x128xf32>
    %c0_38 = arith.constant 0 : index
    %c0_39 = arith.constant 0 : index
    %228 = vector.load %arg6[%c0_38, %c0_39] : memref<128x1xf32, #tpu.memory_space<vmem>>, vector<128x1xf32>
    %229 = vector.shape_cast %228 : vector<128x1xf32> to vector<128x1xf32>
    %230 = vector.broadcast %229 : vector<128x1xf32> to vector<128x256xf32>
    %c0_40 = arith.constant 0 : index
    %c0_41 = arith.constant 0 : index
    %231 = vector.load %arg8[%c0_40, %c0_41] : memref<32x1xf32, #tpu.memory_space<vmem>>, vector<32x1xf32>
    %232 = vector.shape_cast %231 : vector<32x1xf32> to vector<32x1xf32>
    %233 = vector.broadcast %232 : vector<32x1xf32> to vector<32x256xf32>
    %c0_i32 = arith.constant 0 : i32
    %234 = arith.index_cast %c0_i32 : i32 to index
    %c0_42 = arith.constant 0 : index
    %c0_43 = arith.constant 0 : index
    %235 = vector.load %arg1[%234, %c0_42, %c0_43] : memref<1x32x256xf32, #tpu.memory_space<vmem>>, vector<1x32x256xf32>
    %236 = vector.shape_cast %235 : vector<1x32x256xf32> to vector<32x256xf32>
    %237 = vector.extract_strided_slice %236 {offsets = [0, 0], sizes = [16, 256], strides = [1, 1]} : vector<32x256xf32> to vector<16x256xf32>
    %cst = arith.constant dense<0.000000e+00> : vector<128x256xf32>
    %238 = tpu.matmul %225, %237, %cst {dimension_numbers = #tpu.dot_dimension_numbers<[1], [0], [0], [1], [0, 0, 1, 1], [], []>} : vector<128x16xf32>, vector<16x256xf32>, vector<128x256xf32> -> vector<128x256xf32>
    %239 = arith.index_cast %c0_i32 : i32 to index
    %c0_44 = arith.constant 0 : index
    %c0_45 = arith.constant 0 : index
    %240 = vector.load %arg10[%239, %c0_44, %c0_45] : memref<1x16x256xf32, #tpu.memory_space<vmem>>, vector<1x16x256xf32>
    %241 = vector.shape_cast %240 : vector<1x16x256xf32> to vector<16x256xf32>
    %cst_46 = arith.constant dense<0.000000e+00> : vector<128x256xf32>
    %242 = tpu.matmul %226, %241, %cst_46 {dimension_numbers = #tpu.dot_dimension_numbers<[1], [0], [0], [1], [0, 0, 1, 1], [], []>} : vector<128x16xf32>, vector<16x256xf32>, vector<128x256xf32> -> vector<128x256xf32>
    %243 = arith.addf %238, %242 : vector<128x256xf32>
    %244 = arith.addf %243, %230 : vector<128x256xf32>
    %cst_47 = arith.constant 5.000000e-01 : f32
    %245 = vector.broadcast %cst_47 : f32 to vector<128x256xf32>
    %246 = arith.mulf %245, %244 : vector<128x256xf32>
    %cst_48 = arith.constant 0.707106769 : f32
    %247 = vector.broadcast %cst_48 : f32 to vector<128x256xf32>
    %248 = arith.mulf %244, %247 : vector<128x256xf32>
    %249 = math.erf %248 : vector<128x256xf32>
    %cst_49 = arith.constant 1.000000e+00 : f32
    %250 = vector.broadcast %cst_49 : f32 to vector<128x256xf32>
    %251 = arith.addf %250, %249 : vector<128x256xf32>
    %252 = arith.mulf %246, %251 : vector<128x256xf32>
    %cst_50 = arith.constant dense<0.000000e+00> : vector<32x256xf32>
    %253 = tpu.matmul %227, %252, %cst_50 {dimension_numbers = #tpu.dot_dimension_numbers<[1], [0], [0], [1], [0, 0, 1, 1], [], []>} : vector<32x128xf32>, vector<128x256xf32>, vector<32x256xf32> -> vector<32x256xf32>
    %254 = arith.addf %253, %233 : vector<32x256xf32>
    %255 = arith.addf %236, %254 : vector<32x256xf32>
    %256 = arith.index_cast %c0_i32 : i32 to index
    %c0_51 = arith.constant 0 : index
    %c0_52 = arith.constant 0 : index
    %257 = vector.load %arg9[%256, %c0_51, %c0_52] : memref<1x32x256xf32, #tpu.memory_space<vmem>>, vector<1x32x256xf32>
    %258 = vector.shape_cast %257 : vector<1x32x256xf32> to vector<32x256xf32>
    %259 = vector.shape_cast %255 : vector<32x256xf32> to vector<1x32x256xf32>
    tpu.vector_store %arg9[%256, %c0_51, %c0_52], %259 {strides = array<i32>} : memref<1x32x256xf32, #tpu.memory_space<vmem>>, vector<1x32x256xf32>,
    %c1_i32_53 = arith.constant 1 : i32
    return
  }
  func.func @transform_0(%arg0: i32) -> (i32, i32, i32) {
    %c0_i32 = arith.constant 0 : i32
    %c0_i32_0 = arith.constant 0 : i32
    %c0_i32_1 = arith.constant 0 : i32
    return %arg0, %c0_i32, %c0_i32_0 : i32, i32, i32
  }
  func.func @transform_1(%arg0: i32) -> (i32, i32, i32) {
    %c0_i32 = arith.constant 0 : i32
    %c0_i32_0 = arith.constant 0 : i32
    %c0_i32_1 = arith.constant 0 : i32
    %c0_i32_2 = arith.constant 0 : i32
    return %c0_i32, %c0_i32_0, %c0_i32_1 : i32, i32, i32
  }
  func.func @transform_2(%arg0: i32) -> (i32, i32) {
    %c0_i32 = arith.constant 0 : i32
    %c0_i32_0 = arith.constant 0 : i32
    %c0_i32_1 = arith.constant 0 : i32
    return %c0_i32, %c0_i32_0 : i32, i32
  }
  func.func @transform_3(%arg0: i32) -> (i32, i32) {
    %c0_i32 = arith.constant 0 : i32
    %c0_i32_0 = arith.constant 0 : i32
    %c0_i32_1 = arith.constant 0 : i32
    return %c0_i32, %c0_i32_0 : i32, i32
  }
  func.func @transform_4(%arg0: i32) -> (i32, i32) {
    %c0_i32 = arith.constant 0 : i32
    %c0_i32_0 = arith.constant 0 : i32
    %c0_i32_1 = arith.constant 0 : i32
    return %c0_i32, %c0_i32_0 : i32, i32
  }
  func.func @transform_5(%arg0: i32) -> (i32, i32) {
    %c0_i32 = arith.constant 0 : i32
    %c0_i32_0 = arith.constant 0 : i32
    %c0_i32_1 = arith.constant 0 : i32
    return %c0_i32, %c0_i32_0 : i32, i32
  }
  func.func @transform_6(%arg0: i32) -> (i32, i32) {
    %c0_i32 = arith.constant 0 : i32
    %c0_i32_0 = arith.constant 0 : i32
    %c0_i32_1 = arith.constant 0 : i32
    return %c0_i32, %c0_i32_0 : i32, i32
  }
  func.func @transform_7(%arg0: i32) -> (i32, i32) {
    %c0_i32 = arith.constant 0 : i32
    %c0_i32_0 = arith.constant 0 : i32
    %c0_i32_1 = arith.constant 0 : i32
    return %c0_i32, %c0_i32_0 : i32, i32
  }
  func.func @transform_8(%arg0: i32) -> (i32, i32, i32) {
    %c0_i32 = arith.constant 0 : i32
    %c0_i32_0 = arith.constant 0 : i32
    %c0_i32_1 = arith.constant 0 : i32
    return %arg0, %c0_i32, %c0_i32_0 : i32, i32, i32
  }
}

</mosaic_0001>

<llo_original>
// kernel: metanext_block.1
$region0: #{metanext_block.1}
  #allocation0 [shape = 'u32[]', space=smem, size = 0x4, offset = 0x4, fixed_abs, tag = 'smem constant byte address 0x4 - core index']
  #allocation1 [shape = 'u32[144,128]{1,0:T(1,128)}', space=vmem, size = 0x12000, scoped, tag = 'internal scratch']
  #allocation2 [shape = 'f32[1,16,256]{2,1,0:T(8,128)}', space=vmem, size = 0x4000, scoped, tag = 'scratch operand']
  %s0 = inlined_call_operand.vmem [shape: f32[2,32,256], index: 0, kind: input, shape index: {}]
  %s1 = inlined_call_operand.vmem [shape: f32[25,16,1], index: 1, kind: input, shape index: {}]
  %s2 = inlined_call_operand.vmem [shape: f32[25,256], index: 2, kind: input, shape index: {}]
  %s3 = inlined_call_operand.vmem [shape: f32[128,16], index: 3, kind: input, shape index: {}]
  %s4 = inlined_call_operand.vmem [shape: f32[128,16], index: 4, kind: input, shape index: {}]
  %s5 = inlined_call_operand.vmem [shape: f32[128,1], index: 5, kind: input, shape index: {}]
  %s6 = inlined_call_operand.vmem [shape: f32[32,128], index: 6, kind: input, shape index: {}]
  %s7 = inlined_call_operand.vmem [shape: f32[32,1], index: 7, kind: input, shape index: {}]
  %s8 = inlined_call_operand.vmem [shape: f32[2,32,256], index: 8, kind: output, shape index: {}]
  %s9 = sld [smem:[#allocation0]]
  $region65: #{metanext_block.1} parent=0
    _
  %s11 = ssub.s32 1, %s9
  %s12 = scalar_select 0, %s11, %s9
  loop: start=0, step=1, limit=4
  $region2: #{metanext_block.1} parent=0 // loop_pre_header
    _
  $region3: #{metanext_block.1} parent=0 // loop_header
    %s14 = sphi 0, %s18
    %p15 = scmp.ge.s32.totalorder %s14, 4
    %s24 = sphi 0, %s26
    %s27 = sphi 0, %s24
    %s28 = sphi 0, %s27
    %s44 = sphi 0, %s28
    %s48 = sphi 0, %s48
    %s50 = sphi 0, %s48
    %s51 = sphi 0, %s50
    %s65 = sphi 0, %s51
    %s69 = sphi 0, %s69
    %s71 = sphi 0, %s69
    %s72 = sphi 0, %s71
    %s86 = sphi 0, %s72
    %s90 = sphi 0, %s90
    %s92 = sphi 0, %s90
    %s93 = sphi 0, %s92
    %s107 = sphi 0, %s93
    %s111 = sphi 0, %s111
    %s113 = sphi 0, %s111
    %s114 = sphi 0, %s113
    %s128 = sphi 0, %s114
    %s132 = sphi 0, %s132
    %s134 = sphi 0, %s132
    %s135 = sphi 0, %s134
    %s149 = sphi 0, %s135
    %s153 = sphi 0, %s153
    %s155 = sphi 0, %s153
    %s156 = sphi 0, %s155
    %s170 = sphi 0, %s156
    %s174 = sphi 0, %s174
    %s176 = sphi 0, %s174
    %s177 = sphi 0, %s176
    %s191 = sphi 0, %s177
    %s197 = sphi 0, %s199
    %s200 = sphi 0, %s197
    %s201 = sphi 0, %s200
    %s217 = sphi 0, %s201
  $region4: #{metanext_block.1} parent=0 // loop_header_branch
    %17 = sbr.rel (%p15) target = $region8
  $region5: #{metanext_block.1} parent=0 // loop_body
    %s19 = ssub.s32 %s14, 1
    %s20 = ssub.s32 %s14, 2
    %s21 = sadd.s32 %s14, 1
    %s22 = ssub.s32 %s14, %s21
    %p23 = scmp.eq.s32.totalorder %s22, 0
    %s25 = sadd.s32 %s24, 1
    %s26 = scalar_select %p23, %s24, %s25
    %p29 = pneg %p23
    %p30 = scmp.eq.s32.totalorder %s14, 1
    %p31 = por %p29, %p30
    %p32 = scmp.ne.s32.totalorder %s24, %s27
    %p33 = scmp.eq.s32.totalorder %s14, 0
    %p34 = por %p32, %p33
    %p35 = scmp.ne.s32.totalorder %s24, %s27
    %p36 = scmp.eq.s32.totalorder %s19, 1
    %p37 = por %p35, %p36
    %p38 = scmp.ne.s32.totalorder %s27, %s28
    %p39 = scmp.eq.s32.totalorder %s19, 0
    %p40 = por %p38, %p39
    %p41 = scmp.ne.s32.totalorder %s27, %s28
    %p42 = scmp.eq.s32.totalorder %s20, 1
    %p43 = por %p41, %p42
    %p45 = scmp.ne.s32.totalorder %s28, %s44
    %p46 = scmp.eq.s32.totalorder %s20, 0
    %p47 = por %p45, %p46
    %s49 = sadd.s32 %s48, 1
    %p52 = scmp.eq.s32.totalorder %s14, 1
    %p53 = scmp.ne.s32.totalorder %s48, %s50
    %p54 = scmp.eq.s32.totalorder %s14, 0
    %p55 = por %p53, %p54
    %p56 = scmp.ne.s32.totalorder %s48, %s50
    %p57 = scmp.eq.s32.totalorder %s19, 1
    %p58 = por %p56, %p57
    %p59 = scmp.ne.s32.totalorder %s50, %s51
    %p60 = scmp.eq.s32.totalorder %s19, 0
    %p61 = por %p59, %p60
    %p62 = scmp.ne.s32.totalorder %s50, %s51
    %p63 = scmp.eq.s32.totalorder %s20, 1
    %p64 = por %p62, %p63
    %p66 = scmp.ne.s32.totalorder %s51, %s65
    %p67 = scmp.eq.s32.totalorder %s20, 0
    %p68 = por %p66, %p67
    %s70 = sadd.s32 %s69, 1
    %p73 = scmp.eq.s32.totalorder %s14, 1
    %p74 = scmp.ne.s32.totalorder %s69, %s71
    %p75 = scmp.eq.s32.totalorder %s14, 0
    %p76 = por %p74, %p75
    %p77 = scmp.ne.s32.totalorder %s69, %s71
    %p78 = scmp.eq.s32.totalorder %s19, 1
    %p79 = por %p77, %p78
    %p80 = scmp.ne.s32.totalorder %s71, %s72
    %p81 = scmp.eq.s32.totalorder %s19, 0
    %p82 = por %p80, %p81
    %p83 = scmp.ne.s32.totalorder %s71, %s72
    %p84 = scmp.eq.s32.totalorder %s20, 1
    %p85 = por %p83, %p84
    %p87 = scmp.ne.s32.totalorder %s72, %s86
    %p88 = scmp.eq.s32.totalorder %s20, 0
    %p89 = por %p87, %p88
    %s91 = sadd.s32 %s90, 1
    %p94 = scmp.eq.s32.totalorder %s14, 1
    %p95 = scmp.ne.s32.totalorder %s90, %s92
    %p96 = scmp.eq.s32.totalorder %s14, 0
    %p97 = por %p95, %p96
    %p98 = scmp.ne.s32.totalorder %s90, %s92
    %p99 = scmp.eq.s32.totalorder %s19, 1
    %p100 = por %p98, %p99
    %p101 = scmp.ne.s32.totalorder %s92, %s93
    %p102 = scmp.eq.s32.totalorder %s19, 0
    %p103 = por %p101, %p102
    %p104 = scmp.ne.s32.totalorder %s92, %s93
    %p105 = scmp.eq.s32.totalorder %s20, 1
    %p106 = por %p104, %p105
    %p108 = scmp.ne.s32.totalorder %s93, %s107
    %p109 = scmp.eq.s32.totalorder %s20, 0
    %p110 = por %p108, %p109
    %s112 = sadd.s32 %s111, 1
    %p115 = scmp.eq.s32.totalorder %s14, 1
    %p116 = scmp.ne.s32.totalorder %s111, %s113
    %p117 = scmp.eq.s32.totalorder %s14, 0
    %p118 = por %p116, %p117
    %p119 = scmp.ne.s32.totalorder %s111, %s113
    %p120 = scmp.eq.s32.totalorder %s19, 1
    %p121 = por %p119, %p120
    %p122 = scmp.ne.s32.totalorder %s113, %s114
    %p123 = scmp.eq.s32.totalorder %s19, 0
    %p124 = por %p122, %p123
    %p125 = scmp.ne.s32.totalorder %s113, %s114
    %p126 = scmp.eq.s32.totalorder %s20, 1
    %p127 = por %p125, %p126
    %p129 = scmp.ne.s32.totalorder %s114, %s128
    %p130 = scmp.eq.s32.totalorder %s20, 0
    %p131 = por %p129, %p130
    %s133 = sadd.s32 %s132, 1
    %p136 = scmp.eq.s32.totalorder %s14, 1
    %p137 = scmp.ne.s32.totalorder %s132, %s134
    %p138 = scmp.eq.s32.totalorder %s14, 0
    %p139 = por %p137, %p138
    %p140 = scmp.ne.s32.totalorder %s132, %s134
    %p141 = scmp.eq.s32.totalorder %s19, 1
    %p142 = por %p140, %p141
    %p143 = scmp.ne.s32.totalorder %s134, %s135
    %p144 = scmp.eq.s32.totalorder %s19, 0
    %p145 = por %p143, %p144
    %p146 = scmp.ne.s32.totalorder %s134, %s135
    %p147 = scmp.eq.s32.totalorder %s20, 1
    %p148 = por %p146, %p147
    %p150 = scmp.ne.s32.totalorder %s135, %s149
    %p151 = scmp.eq.s32.totalorder %s20, 0
    %p152 = por %p150, %p151
    %s154 = sadd.s32 %s153, 1
    %p157 = scmp.eq.s32.totalorder %s14, 1
    %p158 = scmp.ne.s32.totalorder %s153, %s155
    %p159 = scmp.eq.s32.totalorder %s14, 0
    %p160 = por %p158, %p159
    %p161 = scmp.ne.s32.totalorder %s153, %s155
    %p162 = scmp.eq.s32.totalorder %s19, 1
    %p163 = por %p161, %p162
    %p164 = scmp.ne.s32.totalorder %s155, %s156
    %p165 = scmp.eq.s32.totalorder %s19, 0
    %p166 = por %p164, %p165
    %p167 = scmp.ne.s32.totalorder %s155, %s156
    %p168 = scmp.eq.s32.totalorder %s20, 1
    %p169 = por %p167, %p168
    %p171 = scmp.ne.s32.totalorder %s156, %s170
    %p172 = scmp.eq.s32.totalorder %s20, 0
    %p173 = por %p171, %p172
    %s175 = sadd.s32 %s174, 1
    %p178 = scmp.eq.s32.totalorder %s14, 1
    %p179 = scmp.ne.s32.totalorder %s174, %s176
    %p180 = scmp.eq.s32.totalorder %s14, 0
    %p181 = por %p179, %p180
    %p182 = scmp.ne.s32.totalorder %s174, %s176
    %p183 = scmp.eq.s32.totalorder %s19, 1
    %p184 = por %p182, %p183
    %p185 = scmp.ne.s32.totalorder %s176, %s177
    %p186 = scmp.eq.s32.totalorder %s19, 0
    %p187 = por %p185, %p186
    %p188 = scmp.ne.s32.totalorder %s176, %s177
    %p189 = scmp.eq.s32.totalorder %s20, 1
    %p190 = por %p188, %p189
    %p192 = scmp.ne.s32.totalorder %s177, %s191
    %p193 = scmp.eq.s32.totalorder %s20, 0
    %p194 = por %p192, %p193
    %s195 = ssub.s32 %s14, %s21
    %p196 = scmp.eq.s32.totalorder %s195, 0
    %s198 = sadd.s32 %s197, 1
    %s199 = scalar_select %p196, %s197, %s198
    %p202 = pneg %p196
    %p203 = scmp.eq.s32.totalorder %s14, 1
    %p204 = por %p202, %p203
    %p205 = scmp.ne.s32.totalorder %s197, %s200
    %p206 = scmp.eq.s32.totalorder %s14, 0
    %p207 = por %p205, %p206
    %p208 = scmp.ne.s32.totalorder %s197, %s200
    %p209 = scmp.eq.s32.totalorder %s19, 1
    %p210 = por %p208, %p209
    %p211 = scmp.ne.s32.totalorder %s200, %s201
    %p212 = scmp.eq.s32.totalorder %s19, 0
    %p213 = por %p211, %p212
    %p214 = scmp.ne.s32.totalorder %s200, %s201
    %p215 = scmp.eq.s32.totalorder %s20, 1
    %p216 = por %p214, %p215
    %p218 = scmp.ne.s32.totalorder %s201, %s217
    %p219 = scmp.eq.s32.totalorder %s20, 0
    %p220 = por %p218, %p219
    %p221 = scmp.le.s32.totalorder 1, %s14
    %p222 = scmp.lt.s32.totalorder %s14, 3
    %p223 = pnand %p221, %p222
    %p224 = pneg %p223
    // Predicated region
    $region9: #{metanext_block.1} parent=5 // pred_check
      _
    $region10: #{metanext_block.1} parent=5 // pred_check_branch
      %226 = sbr.rel (%p223) target = $region12
    $region11: #{metanext_block.1} parent=5 // pred_region
      %s227 = ssub.s32 %s14, 1
      // Predicated region
      $region13: #{metanext_block.1} parent=11 // pred_check
        %p228 = pneg %p61
      $region14: #{metanext_block.1} parent=11 // pred_check_branch
        %230 = sbr.rel (%p228) target = $region16
      $region15: #{metanext_block.1} parent=11 // pred_region
        _
      $region16: #{metanext_block.1} parent=11 // pred_fallthru
        _
      // Predicated region
      $region17: #{metanext_block.1} parent=11 // pred_check
        %p231 = pneg %p82
      $region18: #{metanext_block.1} parent=11 // pred_check_branch
        %233 = sbr.rel (%p231) target = $region20
      $region19: #{metanext_block.1} parent=11 // pred_region
        _
      $region20: #{metanext_block.1} parent=11 // pred_fallthru
        _
      // Predicated region
      $region21: #{metanext_block.1} parent=11 // pred_check
        %p234 = pneg %p103
      $region22: #{metanext_block.1} parent=11 // pred_check_branch
        %236 = sbr.rel (%p234) target = $region24
      $region23: #{metanext_block.1} parent=11 // pred_region
        _
      $region24: #{metanext_block.1} parent=11 // pred_fallthru
        _
      // Predicated region
      $region25: #{metanext_block.1} parent=11 // pred_check
        %p237 = pneg %p124
      $region26: #{metanext_block.1} parent=11 // pred_check_branch
        %239 = sbr.rel (%p237) target = $region28
      $region27: #{metanext_block.1} parent=11 // pred_region
        _
      $region28: #{metanext_block.1} parent=11 // pred_fallthru
        _
      // Predicated region
      $region29: #{metanext_block.1} parent=11 // pred_check
        %p240 = pneg %p145
      $region30: #{metanext_block.1} parent=11 // pred_check_branch
        %242 = sbr.rel (%p240) target = $region32
      $region31: #{metanext_block.1} parent=11 // pred_region
        _
      $region32: #{metanext_block.1} parent=11 // pred_fallthru
        _
      // Predicated region
      $region33: #{metanext_block.1} parent=11 // pred_check
        %p243 = pneg %p166
      $region34: #{metanext_block.1} parent=11 // pred_check_branch
        %245 = sbr.rel (%p243) target = $region36
      $region35: #{metanext_block.1} parent=11 // pred_region
        _
      $region36: #{metanext_block.1} parent=11 // pred_fallthru
        _
      // Predicated region
      $region37: #{metanext_block.1} parent=11 // pred_check
        %p246 = pneg %p187
      $region38: #{metanext_block.1} parent=11 // pred_check_branch
        %248 = sbr.rel (%p246) target = $region40
      $region39: #{metanext_block.1} parent=11 // pred_region
        _
      $region40: #{metanext_block.1} parent=11 // pred_fallthru
        _
    $region12: #{metanext_block.1} parent=5 // pred_fallthru
      _
    %p249 = scmp.lt.s32.totalorder %s14, 2
    // Predicated region
    $region41: #{metanext_block.1} parent=5 // pred_check
      %p250 = pneg %p249
    $region42: #{metanext_block.1} parent=5 // pred_check_branch
      %252 = sbr.rel (%p250) target = $region44
    $region43: #{metanext_block.1} parent=5 // pred_region
      // Predicated region
      $region45: #{metanext_block.1} parent=43 // pred_check
        %p253 = pneg %p34
      $region46: #{metanext_block.1} parent=43 // pred_check_branch
        %255 = sbr.rel (%p253) target = $region48
      $region47: #{metanext_block.1} parent=43 // pred_region
        %p256 = scmp.lt.s32.totalorder %s14, 1
        %s257 = scalar_select %p256, %s14, 1
        %s258 = smul.addr %s257, 8
        %s259 = smul.addr %s258, 8
        %s260 = scalar_lea.vmem %s0, %s259
      $region48: #{metanext_block.1} parent=43 // pred_fallthru
        _
    $region44: #{metanext_block.1} parent=5 // pred_fallthru
      _
    %p261 = scmp.le.s32.totalorder 1, %s14
    %p262 = scmp.lt.s32.totalorder %s14, 3
    %p263 = pnand %p261, %p262
    %p264 = pneg %p263
    // Predicated region
    $region49: #{metanext_block.1} parent=5 // pred_check
      _
    $region50: #{metanext_block.1} parent=5 // pred_check_branch
      %266 = sbr.rel (%p263) target = $region52
    $region51: #{metanext_block.1} parent=5 // pred_region
      %s267 = ssub.s32 %s14, 1
      %p268 = scmp.lt.s32.totalorder %s19, 1
      %s269 = scalar_select %p268, %s19, 1
      %s270 = smul.addr %s269, 8
      %s271 = smul.addr %s270, 8
      %s272 = scalar_lea.vmem %s0, %s271
      %p273 = pneg %p40
      %p274 = pneg %p37
      %p275 = pneg %p61
      %p276 = pneg %p58
      %p277 = pneg %p82
      %p278 = pneg %p79
      %p279 = pneg %p103
      %p280 = pneg %p100
      %p281 = pneg %p124
      %p282 = pneg %p121
      %p283 = pneg %p145
      %p284 = pneg %p142
      %p285 = pneg %p166
      %p286 = pneg %p163
      %p287 = pneg %p187
      %p288 = pneg %p184
      %p289 = pneg %p213
      %p290 = pneg %p210
      %p291 = scmp.lt.s32.totalorder %s19, 1
      %s292 = scalar_select %p291, %s19, 1
      %s293 = smul.addr %s292, 8
      %s294 = smul.addr %s293, 8
      %s295 = scalar_lea.vmem %s8, %s294
      %p296 = scmp.lt.s32.totalorder %s19, 1
      %s297 = scalar_select %p296, %s19, 1
      %s298 = smul.addr %s297, 8
      %s299 = smul.addr %s298, 8
      %s300 = scalar_lea.vmem %s0, %s299
      %p301 = scmp.lt.s32.totalorder %s19, 1
      %s302 = scalar_select %p301, %s19, 1
      %s303 = smul.addr %s302, 8
      %s304 = smul.addr %s303, 8
      %s305 = scalar_lea.vmem %s8, %s304
      %v306 = vld [vmem:[%s300 + $0x20] sm:$0xff]
      %v307 = vld [vmem:[%s300 + $0x28] sm:$0xff]
      %v308 = vld [vmem:[%s300 + $0x30] sm:$0xff]
      %v309 = vld [vmem:[%s300 + $0x38] sm:$0xff]
      %v310 = vld [vmem:[%s1] sm:$0xff]
      %v311 = vld [vmem:[%s1 + $0x8] sm:$0xff]
      %v312 = vld [vmem:[%s1 + $0x10] sm:$0xff]
      %v313 = vld [vmem:[%s1 + $0x18] sm:$0xff]
      %v314 = vld [vmem:[%s1 + $0x20] sm:$0xff]
      %v315 = vld [vmem:[%s1 + $0x28] sm:$0xff]
      %v316 = vld [vmem:[%s1 + $0x30] sm:$0xff]
      %v317 = vld [vmem:[%s1 + $0x38] sm:$0xff]
      %v318 = vld [vmem:[%s1 + $0x40] sm:$0xff]
      %v319 = vld [vmem:[%s1 + $0x48] sm:$0xff]
      %v320 = vld [vmem:[%s1 + $0x50] sm:$0xff]
      %v321 = vld [vmem:[%s1 + $0x58] sm:$0xff]
      %v322 = vld [vmem:[%s1 + $0x60] sm:$0xff]
      %v323 = vld [vmem:[%s1 + $0x68] sm:$0xff]
      %v324 = vld [vmem:[%s1 + $0x70] sm:$0xff]
      %v325 = vld [vmem:[%s1 + $0x78] sm:$0xff]
      %v326 = vld [vmem:[%s1 + $0x80] sm:$0xff]
      %v327 = vld [vmem:[%s1 + $0x88] sm:$0xff]
      %v328 = vld [vmem:[%s1 + $0x90] sm:$0xff]
      %v329 = vld [vmem:[%s1 + $0x98] sm:$0xff]
      %v330 = vld [vmem:[%s1 + $0xa0] sm:$0xff]
      %v331 = vld [vmem:[%s1 + $0xa8] sm:$0xff]
      %v332 = vld [vmem:[%s1 + $0xb0] sm:$0xff]
      %v333 = vld [vmem:[%s1 + $0xb8] sm:$0xff]
      %v334 = vld [vmem:[%s1 + $0xc0] sm:$0xff]
      %v335 = vld [vmem:[%s1 + $0xc8] sm:$0xff]
      %v336 = vld [vmem:[%s1 + $0xd0] sm:$0xff]
      %v337 = vld [vmem:[%s1 + $0xd8] sm:$0xff]
      %v338 = vld [vmem:[%s1 + $0xe0] sm:$0xff]
      %v339 = vld [vmem:[%s1 + $0xe8] sm:$0xff]
      %v340 = vld [vmem:[%s1 + $0xf0] sm:$0xff]
      %v341 = vld [vmem:[%s1 + $0xf8] sm:$0xff]
      %v342 = vld [vmem:[%s1 + $0x100] sm:$0xff]
      %v343 = vld [vmem:[%s1 + $0x108] sm:$0xff]
      %v344 = vld [vmem:[%s1 + $0x110] sm:$0xff]
      %v345 = vld [vmem:[%s1 + $0x118] sm:$0xff]
      %v346 = vld [vmem:[%s1 + $0x120] sm:$0xff]
      %v347 = vld [vmem:[%s1 + $0x128] sm:$0xff]
      %v348 = vld [vmem:[%s1 + $0x130] sm:$0xff]
      %v349 = vld [vmem:[%s1 + $0x138] sm:$0xff]
      %v350 = vld [vmem:[%s1 + $0x140] sm:$0xff]
      %v351 = vld [vmem:[%s1 + $0x148] sm:$0xff]
      %v352 = vld [vmem:[%s1 + $0x150] sm:$0xff]
      %v353 = vld [vmem:[%s1 + $0x158] sm:$0xff]
      %v354 = vld [vmem:[%s1 + $0x160] sm:$0xff]
      %v355 = vld [vmem:[%s1 + $0x168] sm:$0xff]
      %v356 = vld [vmem:[%s1 + $0x170] sm:$0xff]
      %v357 = vld [vmem:[%s1 + $0x178] sm:$0xff]
      %v358 = vld [vmem:[%s1 + $0x180] sm:$0xff]
      %v359 = vld [vmem:[%s1 + $0x188] sm:$0xff]
      %361 = vset.pattern.permute.xlu0 0
      %362 = vperm.xlu0 %361, %v310
      %v363 = vpop.permute.xlu0 %362
      %366 = vset.pattern.permute.xlu0 0
      %367 = vperm.xlu0 %366, %v311
      %v368 = vpop.permute.xlu0 %367
      %v370 = vmul.f32 %v306, %v363
      %v371 = vmul.f32 %v307, %v363
      %v372 = vmul.f32 %v308, %v368
      %v373 = vmul.f32 %v309, %v368
      %374 = vrot.lane.b32.xlu0 %v306, 17
      %v375 = vpop.permute.xlu0 %374
      %376 = vrot.lane.b32.xlu0 %v308, 17
      %v377 = vpop.permute.xlu0 %376
      %378 = vrot.lane.b32.xlu0 %v307, 17
      %v379 = vpop.permute.xlu0 %378
      %380 = vrot.lane.b32.xlu0 %v309, 17
      %v381 = vpop.permute.xlu0 %380
      %v382 = vlaneseq
      %v383 = vand.u32 %v382, 127
      %vm384 = vcmp.lt.s32.totalorder %v383, 17
      %v385 = vsel %vm384, %v375, %v379
      %v386 = vsel %vm384, %v377, %v381
      %v387 = vsel %vm384, %v379, %v375
      %v388 = vsel %vm384, %v381, %v377
      %390 = vset.pattern.permute.xlu0 0
      %391 = vperm.xlu0 %390, %v312
      %v392 = vpop.permute.xlu0 %391
      %395 = vset.pattern.permute.xlu0 0
      %396 = vperm.xlu0 %395, %v313
      %v397 = vpop.permute.xlu0 %396
      %v399 = vmul.f32 %v387, %v392
      %v400 = vmul.f32 %v385, %v392
      %v401 = vmul.f32 %v388, %v397
      %v402 = vmul.f32 %v386, %v397
      %s403 = scalar_lea.vmem %s2, 1
      %v404 = vld [vmem:[%s403] ss:$8 sm:$0x3]
      %v406 = vlaneseq
      %v407 = vshrl.u32 %v406, 7
      %v408 = vsub.s32 0, %v407
      %v409 = vrot.slane %v404, %v408
      %v410 = vlaneseq
      %v411 = vshrl.u32 %v410, 7
      %v412 = vsub.s32 1, %v411
      %v413 = vrot.slane %v404, %v412
      %v416 = vmul.f32 %v399, %v409
      %v417 = vmul.f32 %v400, %v413
      %v418 = vmul.f32 %v401, %v409
      %v419 = vmul.f32 %v402, %v413
      %v420 = vadd.f32 %v370, %v416
      %v421 = vadd.f32 %v371, %v417
      %v422 = vadd.f32 %v372, %v418
      %v423 = vadd.f32 %v373, %v419
      %424 = vrot.lane.b32.xlu0 %v306, 16
      %v425 = vpop.permute.xlu0 %424
      %426 = vrot.lane.b32.xlu0 %v308, 16
      %v427 = vpop.permute.xlu0 %426
      %428 = vrot.lane.b32.xlu0 %v307, 16
      %v429 = vpop.permute.xlu0 %428
      %430 = vrot.lane.b32.xlu0 %v309, 16
      %v431 = vpop.permute.xlu0 %430
      %vm432 = vcmp.lt.s32.totalorder %v383, 16
      %v433 = vsel %vm432, %v425, %v429
      %v434 = vsel %vm432, %v427, %v431
      %v435 = vsel %vm432, %v429, %v425
      %v436 = vsel %vm432, %v431, %v427
      %438 = vset.pattern.permute.xlu0 0
      %439 = vperm.xlu0 %438, %v314
      %v440 = vpop.permute.xlu0 %439
      %443 = vset.pattern.permute.xlu0 0
      %444 = vperm.xlu0 %443, %v315
      %v445 = vpop.permute.xlu0 %444
      %v447 = vmul.f32 %v435, %v440
      %v448 = vmul.f32 %v433, %v440
      %v449 = vmul.f32 %v436, %v445
      %v450 = vmul.f32 %v434, %v445
      %s451 = scalar_lea.vmem %s2, 2
      %v452 = vld [vmem:[%s451] ss:$8 sm:$0x3]
      %v454 = vlaneseq
      %v455 = vshrl.u32 %v454, 7
      %v456 = vsub.s32 0, %v455
      %v457 = vrot.slane %v452, %v456
      %v458 = vlaneseq
      %v459 = vshrl.u32 %v458, 7
      %v460 = vsub.s32 1, %v459
      %v461 = vrot.slane %v452, %v460
      %v464 = vmul.f32 %v447, %v457
      %v465 = vmul.f32 %v448, %v461
      %v466 = vmul.f32 %v449, %v457
      %v467 = vmul.f32 %v450, %v461
      %v468 = vadd.f32 %v420, %v464
      %v469 = vadd.f32 %v421, %v465
      %v470 = vadd.f32 %v422, %v466
      %v471 = vadd.f32 %v423, %v467
      %472 = vrot.lane.b32.xlu0 %v306, 15
      %v473 = vpop.permute.xlu0 %472
      %474 = vrot.lane.b32.xlu0 %v308, 15
      %v475 = vpop.permute.xlu0 %474
      %476 = vrot.lane.b32.xlu0 %v307, 15
      %v477 = vpop.permute.xlu0 %476
      %478 = vrot.lane.b32.xlu0 %v309, 15
      %v479 = vpop.permute.xlu0 %478
      %vm480 = vcmp.lt.s32.totalorder %v383, 15
      %v481 = vsel %vm480, %v473, %v477
      %v482 = vsel %vm480, %v475, %v479
      %v483 = vsel %vm480, %v477, %v473
      %v484 = vsel %vm480, %v479, %v475
      %486 = vset.pattern.permute.xlu0 0
      %487 = vperm.xlu0 %486, %v316
      %v488 = vpop.permute.xlu0 %487
      %491 = vset.pattern.permute.xlu0 0
      %492 = vperm.xlu0 %491, %v317
      %v493 = vpop.permute.xlu0 %492
      %v495 = vmul.f32 %v483, %v488
      %v496 = vmul.f32 %v481, %v488
      %v497 = vmul.f32 %v484, %v493
      %v498 = vmul.f32 %v482, %v493
      %s499 = scalar_lea.vmem %s2, 3
      %v500 = vld [vmem:[%s499] ss:$8 sm:$0x3]
      %v502 = vlaneseq
      %v503 = vshrl.u32 %v502, 7
      %v504 = vsub.s32 0, %v503
      %v505 = vrot.slane %v500, %v504
      %v506 = vlaneseq
      %v507 = vshrl.u32 %v506, 7
      %v508 = vsub.s32 1, %v507
      %v509 = vrot.slane %v500, %v508
      %v512 = vmul.f32 %v495, %v505
      %v513 = vmul.f32 %v496, %v509
      %v514 = vmul.f32 %v497, %v505
      %v515 = vmul.f32 %v498, %v509
      %v516 = vadd.f32 %v468, %v512
      %v517 = vadd.f32 %v469, %v513
      %v518 = vadd.f32 %v470, %v514
      %v519 = vadd.f32 %v471, %v515
      %520 = vrot.lane.b32.xlu0 %v306, 1
      %v521 = vpop.permute.xlu0 %520
      %522 = vrot.lane.b32.xlu0 %v308, 1
      %v523 = vpop.permute.xlu0 %522
      %524 = vrot.lane.b32.xlu0 %v307, 1
      %v525 = vpop.permute.xlu0 %524
      %526 = vrot.lane.b32.xlu0 %v309, 1
      %v527 = vpop.permute.xlu0 %526
      %vm528 = vcmp.lt.s32.totalorder %v383, 1
      %v529 = vsel %vm528, %v521, %v525
      %v530 = vsel %vm528, %v523, %v527
      %v531 = vsel %vm528, %v525, %v521
      %v532 = vsel %vm528, %v527, %v523
      %534 = vset.pattern.permute.xlu0 0
      %535 = vperm.xlu0 %534, %v318
      %v536 = vpop.permute.xlu0 %535
      %539 = vset.pattern.permute.xlu0 0
      %540 = vperm.xlu0 %539, %v319
      %v541 = vpop.permute.xlu0 %540
      %v543 = vmul.f32 %v531, %v536
      %v544 = vmul.f32 %v529, %v536
      %v545 = vmul.f32 %v532, %v541
      %v546 = vmul.f32 %v530, %v541
      %s547 = scalar_lea.vmem %s2, 4
      %v548 = vld [vmem:[%s547] ss:$8 sm:$0x3]
      %v550 = vlaneseq
      %v551 = vshrl.u32 %v550, 7
      %v552 = vsub.s32 0, %v551
      %v553 = vrot.slane %v548, %v552
      %v554 = vlaneseq
      %v555 = vshrl.u32 %v554, 7
      %v556 = vsub.s32 1, %v555
      %v557 = vrot.slane %v548, %v556
      %v560 = vmul.f32 %v543, %v553
      %v561 = vmul.f32 %v544, %v557
      %v562 = vmul.f32 %v545, %v553
      %v563 = vmul.f32 %v546, %v557
      %v564 = vadd.f32 %v516, %v560
      %v565 = vadd.f32 %v517, %v561
      %v566 = vadd.f32 %v518, %v562
      %v567 = vadd.f32 %v519, %v563
      %568 = vrot.lane.b32.xlu0 %v306, 127
      %v569 = vpop.permute.xlu0 %568
      %570 = vrot.lane.b32.xlu0 %v308, 127
      %v571 = vpop.permute.xlu0 %570
      %572 = vrot.lane.b32.xlu0 %v307, 127
      %v573 = vpop.permute.xlu0 %572
      %574 = vrot.lane.b32.xlu0 %v309, 127
      %v575 = vpop.permute.xlu0 %574
      %vm576 = vcmp.lt.s32.totalorder %v383, 127
      %v577 = vsel %vm576, %v569, %v573
      %v578 = vsel %vm576, %v571, %v575
      %v579 = vsel %vm576, %v573, %v569
      %v580 = vsel %vm576, %v575, %v571
      %582 = vset.pattern.permute.xlu0 0
      %583 = vperm.xlu0 %582, %v320
      %v584 = vpop.permute.xlu0 %583
      %587 = vset.pattern.permute.xlu0 0
      %588 = vperm.xlu0 %587, %v321
      %v589 = vpop.permute.xlu0 %588
      %v591 = vmul.f32 %v577, %v584
      %v592 = vmul.f32 %v579, %v584
      %v593 = vmul.f32 %v578, %v589
      %v594 = vmul.f32 %v580, %v589
      %s595 = scalar_lea.vmem %s2, 5
      %v596 = vld [vmem:[%s595] ss:$8 sm:$0x3]
      %v598 = vlaneseq
      %v599 = vshrl.u32 %v598, 7
      %v600 = vsub.s32 0, %v599
      %v601 = vrot.slane %v596, %v600
      %v602 = vlaneseq
      %v603 = vshrl.u32 %v602, 7
      %v604 = vsub.s32 1, %v603
      %v605 = vrot.slane %v596, %v604
      %v608 = vmul.f32 %v591, %v601
      %v609 = vmul.f32 %v592, %v605
      %v610 = vmul.f32 %v593, %v601
      %v611 = vmul.f32 %v594, %v605
      %v612 = vadd.f32 %v564, %v608
      %v613 = vadd.f32 %v565, %v609
      %v614 = vadd.f32 %v566, %v610
      %v615 = vadd.f32 %v567, %v611
      %616 = vrot.lane.b32.xlu0 %v306, 113
      %v617 = vpop.permute.xlu0 %616
      %618 = vrot.lane.b32.xlu0 %v308, 113
      %v619 = vpop.permute.xlu0 %618
      %620 = vrot.lane.b32.xlu0 %v307, 113
      %v621 = vpop.permute.xlu0 %620
      %622 = vrot.lane.b32.xlu0 %v309, 113
      %v623 = vpop.permute.xlu0 %622
      %vm624 = vcmp.lt.s32.totalorder %v383, 113
      %v625 = vsel %vm624, %v617, %v621
      %v626 = vsel %vm624, %v619, %v623
      %v627 = vsel %vm624, %v621, %v617
      %v628 = vsel %vm624, %v623, %v619
      %630 = vset.pattern.permute.xlu0 0
      %631 = vperm.xlu0 %630, %v322
      %v632 = vpop.permute.xlu0 %631
      %635 = vset.pattern.permute.xlu0 0
      %636 = vperm.xlu0 %635, %v323
      %v637 = vpop.permute.xlu0 %636
      %v639 = vmul.f32 %v625, %v632
      %v640 = vmul.f32 %v627, %v632
      %v641 = vmul.f32 %v626, %v637
      %v642 = vmul.f32 %v628, %v637
      %s643 = scalar_lea.vmem %s2, 6
      %v644 = vld [vmem:[%s643] ss:$8 sm:$0x3]
      %v646 = vlaneseq
      %v647 = vshrl.u32 %v646, 7
      %v648 = vsub.s32 0, %v647
      %v649 = vrot.slane %v644, %v648
      %v650 = vlaneseq
      %v651 = vshrl.u32 %v650, 7
      %v652 = vsub.s32 1, %v651
      %v653 = vrot.slane %v644, %v652
      %v656 = vmul.f32 %v639, %v649
      %v657 = vmul.f32 %v640, %v653
      %v658 = vmul.f32 %v641, %v649
      %v659 = vmul.f32 %v642, %v653
      %v660 = vadd.f32 %v612, %v656
      %v661 = vadd.f32 %v613, %v657
      %v662 = vadd.f32 %v614, %v658
      %v663 = vadd.f32 %v615, %v659
      %664 = vrot.lane.b32.xlu0 %v306, 112
      %v665 = vpop.permute.xlu0 %664
      %666 = vrot.lane.b32.xlu0 %v308, 112
      %v667 = vpop.permute.xlu0 %666
      %668 = vrot.lane.b32.xlu0 %v307, 112
      %v669 = vpop.permute.xlu0 %668
      %670 = vrot.lane.b32.xlu0 %v309, 112
      %v671 = vpop.permute.xlu0 %670
      %vm672 = vcmp.lt.s32.totalorder %v383, 112
      %v673 = vsel %vm672, %v665, %v669
      %v674 = vsel %vm672, %v667, %v671
      %v675 = vsel %vm672, %v669, %v665
      %v676 = vsel %vm672, %v671, %v667
      %678 = vset.pattern.permute.xlu0 0
      %679 = vperm.xlu0 %678, %v324
      %v680 = vpop.permute.xlu0 %679
      %683 = vset.pattern.permute.xlu0 0
      %684 = vperm.xlu0 %683, %v325
      %v685 = vpop.permute.xlu0 %684
      %v687 = vmul.f32 %v673, %v680
      %v688 = vmul.f32 %v675, %v680
      %v689 = vmul.f32 %v674, %v685
      %v690 = vmul.f32 %v676, %v685
      %s691 = scalar_lea.vmem %s2, 7
      %v692 = vld [vmem:[%s691] ss:$8 sm:$0x3]
      %v694 = vlaneseq
      %v695 = vshrl.u32 %v694, 7
      %v696 = vsub.s32 0, %v695
      %v697 = vrot.slane %v692, %v696
      %v698 = vlaneseq
      %v699 = vshrl.u32 %v698, 7
      %v700 = vsub.s32 1, %v699
      %v701 = vrot.slane %v692, %v700
      %v704 = vmul.f32 %v687, %v697
      %v705 = vmul.f32 %v688, %v701
      %v706 = vmul.f32 %v689, %v697
      %v707 = vmul.f32 %v690, %v701
      %v708 = vadd.f32 %v660, %v704
      %v709 = vadd.f32 %v661, %v705
      %v710 = vadd.f32 %v662, %v706
      %v711 = vadd.f32 %v663, %v707
      %712 = vrot.lane.b32.xlu0 %v306, 111
      %v713 = vpop.permute.xlu0 %712
      %714 = vrot.lane.b32.xlu0 %v308, 111
      %v715 = vpop.permute.xlu0 %714
      %716 = vrot.lane.b32.xlu0 %v307, 111
      %v717 = vpop.permute.xlu0 %716
      %718 = vrot.lane.b32.xlu0 %v309, 111
      %v719 = vpop.permute.xlu0 %718
      %vm720 = vcmp.lt.s32.totalorder %v383, 111
      %v721 = vsel %vm720, %v713, %v717
      %v722 = vsel %vm720, %v715, %v719
      %v723 = vsel %vm720, %v717, %v713
      %v724 = vsel %vm720, %v719, %v715
      %726 = vset.pattern.permute.xlu0 0
      %727 = vperm.xlu0 %726, %v326
      %v728 = vpop.permute.xlu0 %727
      %731 = vset.pattern.permute.xlu0 0
      %732 = vperm.xlu0 %731, %v327
      %v733 = vpop.permute.xlu0 %732
      %v735 = vmul.f32 %v721, %v728
      %v736 = vmul.f32 %v723, %v728
      %v737 = vmul.f32 %v722, %v733
      %v738 = vmul.f32 %v724, %v733
      %s739 = scalar_lea.vmem %s2, 16
      %v740 = vld [vmem:[%s739] ss:$8 sm:$0x3]
      %v742 = vlaneseq
      %v743 = vshrl.u32 %v742, 7
      %v744 = vsub.s32 0, %v743
      %v745 = vrot.slane %v740, %v744
      %v746 = vlaneseq
      %v747 = vshrl.u32 %v746, 7
      %v748 = vsub.s32 1, %v747
      %v749 = vrot.slane %v740, %v748
      %v752 = vmul.f32 %v735, %v745
      %v753 = vmul.f32 %v736, %v749
      %v754 = vmul.f32 %v737, %v745
      %v755 = vmul.f32 %v738, %v749
      %v756 = vadd.f32 %v708, %v752
      %v757 = vadd.f32 %v709, %v753
      %v758 = vadd.f32 %v710, %v754
      %v759 = vadd.f32 %v711, %v755
      %760 = vrot.lane.b32.xlu0 %v306, 5
      %v761 = vpop.permute.xlu0 %760
      %762 = vrot.lane.b32.xlu0 %v308, 5
      %v763 = vpop.permute.xlu0 %762
      %764 = vrot.lane.b32.xlu0 %v307, 5
      %v765 = vpop.permute.xlu0 %764
      %766 = vrot.lane.b32.xlu0 %v309, 5
      %v767 = vpop.permute.xlu0 %766
      %vm768 = vcmp.lt.s32.totalorder %v383, 5
      %v769 = vsel %vm768, %v761, %v765
      %v770 = vsel %vm768, %v763, %v767
      %v771 = vsel %vm768, %v765, %v761
      %v772 = vsel %vm768, %v767, %v763
      %774 = vset.pattern.permute.xlu0 0
      %775 = vperm.xlu0 %774, %v328
      %v776 = vpop.permute.xlu0 %775
      %779 = vset.pattern.permute.xlu0 0
      %780 = vperm.xlu0 %779, %v329
      %v781 = vpop.permute.xlu0 %780
      %v783 = vmul.f32 %v771, %v776
      %v784 = vmul.f32 %v769, %v776
      %v785 = vmul.f32 %v772, %v781
      %v786 = vmul.f32 %v770, %v781
      %s787 = scalar_lea.vmem %s2, 17
      %v788 = vld [vmem:[%s787] ss:$8 sm:$0x3]
      %v790 = vlaneseq
      %v791 = vshrl.u32 %v790, 7
      %v792 = vsub.s32 0, %v791
      %v793 = vrot.slane %v788, %v792
      %v794 = vlaneseq
      %v795 = vshrl.u32 %v794, 7
      %v796 = vsub.s32 1, %v795
      %v797 = vrot.slane %v788, %v796
      %v800 = vmul.f32 %v783, %v793
      %v801 = vmul.f32 %v784, %v797
      %v802 = vmul.f32 %v785, %v793
      %v803 = vmul.f32 %v786, %v797
      %v804 = vadd.f32 %v756, %v800
      %v805 = vadd.f32 %v757, %v801
      %v806 = vadd.f32 %v758, %v802
      %v807 = vadd.f32 %v759, %v803
      %808 = vrot.lane.b32.xlu0 %v306, 4
      %v809 = vpop.permute.xlu0 %808
      %810 = vrot.lane.b32.xlu0 %v308, 4
      %v811 = vpop.permute.xlu0 %810
      %812 = vrot.lane.b32.xlu0 %v307, 4
      %v813 = vpop.permute.xlu0 %812
      %814 = vrot.lane.b32.xlu0 %v309, 4
      %v815 = vpop.permute.xlu0 %814
      %vm816 = vcmp.lt.s32.totalorder %v383, 4
      %v817 = vsel %vm816, %v809, %v813
      %v818 = vsel %vm816, %v811, %v815
      %v819 = vsel %vm816, %v813, %v809
      %v820 = vsel %vm816, %v815, %v811
      %822 = vset.pattern.permute.xlu0 0
      %823 = vperm.xlu0 %822, %v330
      %v824 = vpop.permute.xlu0 %823
      %827 = vset.pattern.permute.xlu0 0
      %828 = vperm.xlu0 %827, %v331
      %v829 = vpop.permute.xlu0 %828
      %v831 = vmul.f32 %v819, %v824
      %v832 = vmul.f32 %v817, %v824
      %v833 = vmul.f32 %v820, %v829
      %v834 = vmul.f32 %v818, %v829
      %s835 = scalar_lea.vmem %s2, 18
      %v836 = vld [vmem:[%s835] ss:$8 sm:$0x3]
      %v838 = vlaneseq
      %v839 = vshrl.u32 %v838, 7
      %v840 = vsub.s32 0, %v839
      %v841 = vrot.slane %v836, %v840
      %v842 = vlaneseq
      %v843 = vshrl.u32 %v842, 7
      %v844 = vsub.s32 1, %v843
      %v845 = vrot.slane %v836, %v844
      %v848 = vmul.f32 %v831, %v841
      %v849 = vmul.f32 %v832, %v845
      %v850 = vmul.f32 %v833, %v841
      %v851 = vmul.f32 %v834, %v845
      %v852 = vadd.f32 %v804, %v848
      %v853 = vadd.f32 %v805, %v849
      %v854 = vadd.f32 %v806, %v850
      %v855 = vadd.f32 %v807, %v851
      %856 = vrot.lane.b32.xlu0 %v306, 3
      %v857 = vpop.permute.xlu0 %856
      %858 = vrot.lane.b32.xlu0 %v308, 3
      %v859 = vpop.permute.xlu0 %858
      %860 = vrot.lane.b32.xlu0 %v307, 3
      %v861 = vpop.permute.xlu0 %860
      %862 = vrot.lane.b32.xlu0 %v309, 3
      %v863 = vpop.permute.xlu0 %862
      %vm864 = vcmp.lt.s32.totalorder %v383, 3
      %v865 = vsel %vm864, %v857, %v861
      %v866 = vsel %vm864, %v859, %v863
      %v867 = vsel %vm864, %v861, %v857
      %v868 = vsel %vm864, %v863, %v859
      %870 = vset.pattern.permute.xlu0 0
      %871 = vperm.xlu0 %870, %v332
      %v872 = vpop.permute.xlu0 %871
      %875 = vset.pattern.permute.xlu0 0
      %876 = vperm.xlu0 %875, %v333
      %v877 = vpop.permute.xlu0 %876
      %v879 = vmul.f32 %v867, %v872
      %v880 = vmul.f32 %v865, %v872
      %v881 = vmul.f32 %v868, %v877
      %v882 = vmul.f32 %v866, %v877
      %s883 = scalar_lea.vmem %s2, 19
      %v884 = vld [vmem:[%s883] ss:$8 sm:$0x3]
      %v886 = vlaneseq
      %v887 = vshrl.u32 %v886, 7
      %v888 = vsub.s32 0, %v887
      %v889 = vrot.slane %v884, %v888
      %v890 = vlaneseq
      %v891 = vshrl.u32 %v890, 7
      %v892 = vsub.s32 1, %v891
      %v893 = vrot.slane %v884, %v892
      %v896 = vmul.f32 %v879, %v889
      %v897 = vmul.f32 %v880, %v893
      %v898 = vmul.f32 %v881, %v889
      %v899 = vmul.f32 %v882, %v893
      %v900 = vadd.f32 %v852, %v896
      %v901 = vadd.f32 %v853, %v897
      %v902 = vadd.f32 %v854, %v898
      %v903 = vadd.f32 %v855, %v899
      %904 = vrot.lane.b32.xlu0 %v306, 2
      %v905 = vpop.permute.xlu0 %904
      %906 = vrot.lane.b32.xlu0 %v308, 2
      %v907 = vpop.permute.xlu0 %906
      %908 = vrot.lane.b32.xlu0 %v307, 2
      %v909 = vpop.permute.xlu0 %908
      %910 = vrot.lane.b32.xlu0 %v309, 2
      %v911 = vpop.permute.xlu0 %910
      %vm912 = vcmp.lt.s32.totalorder %v383, 2
      %v913 = vsel %vm912, %v905, %v909
      %v914 = vsel %vm912, %v907, %v911
      %v915 = vsel %vm912, %v909, %v905
      %v916 = vsel %vm912, %v911, %v907
      %918 = vset.pattern.permute.xlu0 0
      %919 = vperm.xlu0 %918, %v334
      %v920 = vpop.permute.xlu0 %919
      %923 = vset.pattern.permute.xlu0 0
      %924 = vperm.xlu0 %923, %v335
      %v925 = vpop.permute.xlu0 %924
      %v927 = vmul.f32 %v915, %v920
      %v928 = vmul.f32 %v913, %v920
      %v929 = vmul.f32 %v916, %v925
      %v930 = vmul.f32 %v914, %v925
      %s931 = scalar_lea.vmem %s2, 20
      %v932 = vld [vmem:[%s931] ss:$8 sm:$0x3]
      %v934 = vlaneseq
      %v935 = vshrl.u32 %v934, 7
      %v936 = vsub.s32 0, %v935
      %v937 = vrot.slane %v932, %v936
      %v938 = vlaneseq
      %v939 = vshrl.u32 %v938, 7
      %v940 = vsub.s32 1, %v939
      %v941 = vrot.slane %v932, %v940
      %v944 = vmul.f32 %v927, %v937
      %v945 = vmul.f32 %v928, %v941
      %v946 = vmul.f32 %v929, %v937
      %v947 = vmul.f32 %v930, %v941
      %v948 = vadd.f32 %v900, %v944
      %v949 = vadd.f32 %v901, %v945
      %v950 = vadd.f32 %v902, %v946
      %v951 = vadd.f32 %v903, %v947
      %952 = vrot.lane.b32.xlu0 %v306, 126
      %v953 = vpop.permute.xlu0 %952
      %954 = vrot.lane.b32.xlu0 %v308, 126
      %v955 = vpop.permute.xlu0 %954
      %956 = vrot.lane.b32.xlu0 %v307, 126
      %v957 = vpop.permute.xlu0 %956
      %958 = vrot.lane.b32.xlu0 %v309, 126
      %v959 = vpop.permute.xlu0 %958
      %vm960 = vcmp.lt.s32.totalorder %v383, 126
      %v961 = vsel %vm960, %v953, %v957
      %v962 = vsel %vm960, %v955, %v959
      %v963 = vsel %vm960, %v957, %v953
      %v964 = vsel %vm960, %v959, %v955
      %966 = vset.pattern.permute.xlu0 0
      %967 = vperm.xlu0 %966, %v336
      %v968 = vpop.permute.xlu0 %967
      %971 = vset.pattern.permute.xlu0 0
      %972 = vperm.xlu0 %971, %v337
      %v973 = vpop.permute.xlu0 %972
      %v975 = vmul.f32 %v961, %v968
      %v976 = vmul.f32 %v963, %v968
      %v977 = vmul.f32 %v962, %v973
      %v978 = vmul.f32 %v964, %v973
      %s979 = scalar_lea.vmem %s2, 21
      %v980 = vld [vmem:[%s979] ss:$8 sm:$0x3]
      %v982 = vlaneseq
      %v983 = vshrl.u32 %v982, 7
      %v984 = vsub.s32 0, %v983
      %v985 = vrot.slane %v980, %v984
      %v986 = vlaneseq
      %v987 = vshrl.u32 %v986, 7
      %v988 = vsub.s32 1, %v987
      %v989 = vrot.slane %v980, %v988
      %v992 = vmul.f32 %v975, %v985
      %v993 = vmul.f32 %v976, %v989
      %v994 = vmul.f32 %v977, %v985
      %v995 = vmul.f32 %v978, %v989
      %v996 = vadd.f32 %v948, %v992
      %v997 = vadd.f32 %v949, %v993
      %v998 = vadd.f32 %v950, %v994
      %v999 = vadd.f32 %v951, %v995
      %1000 = vrot.lane.b32.xlu0 %v306, 125
      %v1001 = vpop.permute.xlu0 %1000
      %1002 = vrot.lane.b32.xlu0 %v308, 125
      %v1003 = vpop.permute.xlu0 %1002
      %1004 = vrot.lane.b32.xlu0 %v307, 125
      %v1005 = vpop.permute.xlu0 %1004
      %1006 = vrot.lane.b32.xlu0 %v309, 125
      %v1007 = vpop.permute.xlu0 %1006
      %vm1008 = vcmp.lt.s32.totalorder %v383, 125
      %v1009 = vsel %vm1008, %v1001, %v1005
      %v1010 = vsel %vm1008, %v1003, %v1007
      %v1011 = vsel %vm1008, %v1005, %v1001
      %v1012 = vsel %vm1008, %v1007, %v1003
      %1014 = vset.pattern.permute.xlu0 0
      %1015 = vperm.xlu0 %1014, %v338
      %v1016 = vpop.permute.xlu0 %1015
      %1019 = vset.pattern.permute.xlu0 0
      %1020 = vperm.xlu0 %1019, %v339
      %v1021 = vpop.permute.xlu0 %1020
      %v1023 = vmul.f32 %v1009, %v1016
      %v1024 = vmul.f32 %v1011, %v1016
      %v1025 = vmul.f32 %v1010, %v1021
      %v1026 = vmul.f32 %v1012, %v1021
      %s1027 = scalar_lea.vmem %s2, 22
      %v1028 = vld [vmem:[%s1027] ss:$8 sm:$0x3]
      %v1030 = vlaneseq
      %v1031 = vshrl.u32 %v1030, 7
      %v1032 = vsub.s32 0, %v1031
      %v1033 = vrot.slane %v1028, %v1032
      %v1034 = vlaneseq
      %v1035 = vshrl.u32 %v1034, 7
      %v1036 = vsub.s32 1, %v1035
      %v1037 = vrot.slane %v1028, %v1036
      %v1040 = vmul.f32 %v1023, %v1033
      %v1041 = vmul.f32 %v1024, %v1037
      %v1042 = vmul.f32 %v1025, %v1033
      %v1043 = vmul.f32 %v1026, %v1037
      %v1044 = vadd.f32 %v996, %v1040
      %v1045 = vadd.f32 %v997, %v1041
      %v1046 = vadd.f32 %v998, %v1042
      %v1047 = vadd.f32 %v999, %v1043
      %1048 = vrot.lane.b32.xlu0 %v306, 124
      %v1049 = vpop.permute.xlu0 %1048
      %1050 = vrot.lane.b32.xlu0 %v308, 124
      %v1051 = vpop.permute.xlu0 %1050
      %1052 = vrot.lane.b32.xlu0 %v307, 124
      %v1053 = vpop.permute.xlu0 %1052
      %1054 = vrot.lane.b32.xlu0 %v309, 124
      %v1055 = vpop.permute.xlu0 %1054
      %vm1056 = vcmp.lt.s32.totalorder %v383, 124
      %v1057 = vsel %vm1056, %v1049, %v1053
      %v1058 = vsel %vm1056, %v1051, %v1055
      %v1059 = vsel %vm1056, %v1053, %v1049
      %v1060 = vsel %vm1056, %v1055, %v1051
      %1062 = vset.pattern.permute.xlu0 0
      %1063 = vperm.xlu0 %1062, %v340
      %v1064 = vpop.permute.xlu0 %1063
      %1067 = vset.pattern.permute.xlu0 0
      %1068 = vperm.xlu0 %1067, %v341
      %v1069 = vpop.permute.xlu0 %1068
      %v1071 = vmul.f32 %v1057, %v1064
      %v1072 = vmul.f32 %v1059, %v1064
      %v1073 = vmul.f32 %v1058, %v1069
      %v1074 = vmul.f32 %v1060, %v1069
      %s1075 = scalar_lea.vmem %s2, 23
      %v1076 = vld [vmem:[%s1075] ss:$8 sm:$0x3]
      %v1078 = vlaneseq
      %v1079 = vshrl.u32 %v1078, 7
      %v1080 = vsub.s32 0, %v1079
      %v1081 = vrot.slane %v1076, %v1080
      %v1082 = vlaneseq
      %v1083 = vshrl.u32 %v1082, 7
      %v1084 = vsub.s32 1, %v1083
      %v1085 = vrot.slane %v1076, %v1084
      %v1088 = vmul.f32 %v1071, %v1081
      %v1089 = vmul.f32 %v1072, %v1085
      %v1090 = vmul.f32 %v1073, %v1081
      %v1091 = vmul.f32 %v1074, %v1085
      %v1092 = vadd.f32 %v1044, %v1088
      %v1093 = vadd.f32 %v1045, %v1089
      %v1094 = vadd.f32 %v1046, %v1090
      %v1095 = vadd.f32 %v1047, %v1091
      %1096 = vrot.lane.b32.xlu0 %v306, 123
      %v1097 = vpop.permute.xlu0 %1096
      %1098 = vrot.lane.b32.xlu0 %v308, 123
      %v1099 = vpop.permute.xlu0 %1098
      %1100 = vrot.lane.b32.xlu0 %v307, 123
      %v1101 = vpop.permute.xlu0 %1100
      %1102 = vrot.lane.b32.xlu0 %v309, 123
      %v1103 = vpop.permute.xlu0 %1102
      %vm1104 = vcmp.lt.s32.totalorder %v383, 123
      %v1105 = vsel %vm1104, %v1097, %v1101
      %v1106 = vsel %vm1104, %v1099, %v1103
      %v1107 = vsel %vm1104, %v1101, %v1097
      %v1108 = vsel %vm1104, %v1103, %v1099
      %1110 = vset.pattern.permute.xlu0 0
      %1111 = vperm.xlu0 %1110, %v342
      %v1112 = vpop.permute.xlu0 %1111
      %1115 = vset.pattern.permute.xlu0 0
      %1116 = vperm.xlu0 %1115, %v343
      %v1117 = vpop.permute.xlu0 %1116
      %v1119 = vmul.f32 %v1105, %v1112
      %v1120 = vmul.f32 %v1107, %v1112
      %v1121 = vmul.f32 %v1106, %v1117
      %v1122 = vmul.f32 %v1108, %v1117
      %s1123 = scalar_lea.vmem %s2, 32
      %v1124 = vld [vmem:[%s1123] ss:$8 sm:$0x3]
      %v1126 = vlaneseq
      %v1127 = vshrl.u32 %v1126, 7
      %v1128 = vsub.s32 0, %v1127
      %v1129 = vrot.slane %v1124, %v1128
      %v1130 = vlaneseq
      %v1131 = vshrl.u32 %v1130, 7
      %v1132 = vsub.s32 1, %v1131
      %v1133 = vrot.slane %v1124, %v1132
      %v1136 = vmul.f32 %v1119, %v1129
      %v1137 = vmul.f32 %v1120, %v1133
      %v1138 = vmul.f32 %v1121, %v1129
      %v1139 = vmul.f32 %v1122, %v1133
      %v1140 = vadd.f32 %v1092, %v1136
      %v1141 = vadd.f32 %v1093, %v1137
      %v1142 = vadd.f32 %v1094, %v1138
      %v1143 = vadd.f32 %v1095, %v1139
      %1144 = vrot.lane.b32.xlu0 %v306, 80
      %v1145 = vpop.permute.xlu0 %1144
      %1146 = vrot.lane.b32.xlu0 %v308, 80
      %v1147 = vpop.permute.xlu0 %1146
      %1148 = vrot.lane.b32.xlu0 %v307, 80
      %v1149 = vpop.permute.xlu0 %1148
      %1150 = vrot.lane.b32.xlu0 %v309, 80
      %v1151 = vpop.permute.xlu0 %1150
      %vm1152 = vcmp.lt.s32.totalorder %v383, 80
      %v1153 = vsel %vm1152, %v1145, %v1149
      %v1154 = vsel %vm1152, %v1147, %v1151
      %v1155 = vsel %vm1152, %v1149, %v1145
      %v1156 = vsel %vm1152, %v1151, %v1147
      %1158 = vset.pattern.permute.xlu0 0
      %1159 = vperm.xlu0 %1158, %v344
      %v1160 = vpop.permute.xlu0 %1159
      %1163 = vset.pattern.permute.xlu0 0
      %1164 = vperm.xlu0 %1163, %v345
      %v1165 = vpop.permute.xlu0 %1164
      %v1167 = vmul.f32 %v1155, %v1160
      %v1168 = vmul.f32 %v1153, %v1160
      %v1169 = vmul.f32 %v1156, %v1165
      %v1170 = vmul.f32 %v1154, %v1165
      %s1171 = scalar_lea.vmem %s2, 33
      %v1172 = vld [vmem:[%s1171] ss:$8 sm:$0x3]
      %v1174 = vlaneseq
      %v1175 = vshrl.u32 %v1174, 7
      %v1176 = vsub.s32 0, %v1175
      %v1177 = vrot.slane %v1172, %v1176
      %v1178 = vlaneseq
      %v1179 = vshrl.u32 %v1178, 7
      %v1180 = vsub.s32 1, %v1179
      %v1181 = vrot.slane %v1172, %v1180
      %v1184 = vmul.f32 %v1167, %v1177
      %v1185 = vmul.f32 %v1168, %v1181
      %v1186 = vmul.f32 %v1169, %v1177
      %v1187 = vmul.f32 %v1170, %v1181
      %v1188 = vadd.f32 %v1140, %v1184
      %v1189 = vadd.f32 %v1141, %v1185
      %v1190 = vadd.f32 %v1142, %v1186
      %v1191 = vadd.f32 %v1143, %v1187
      %1192 = vrot.lane.b32.xlu0 %v306, 64
      %v1193 = vpop.permute.xlu0 %1192
      %1194 = vrot.lane.b32.xlu0 %v308, 64
      %v1195 = vpop.permute.xlu0 %1194
      %1196 = vrot.lane.b32.xlu0 %v307, 64
      %v1197 = vpop.permute.xlu0 %1196
      %1198 = vrot.lane.b32.xlu0 %v309, 64
      %v1199 = vpop.permute.xlu0 %1198
      %vm1200 = vcmp.lt.s32.totalorder %v383, 64
      %v1201 = vsel %vm1200, %v1193, %v1197
      %v1202 = vsel %vm1200, %v1195, %v1199
      %v1203 = vsel %vm1200, %v1197, %v1193
      %v1204 = vsel %vm1200, %v1199, %v1195
      %1206 = vset.pattern.permute.xlu0 0
      %1207 = vperm.xlu0 %1206, %v346
      %v1208 = vpop.permute.xlu0 %1207
      %1211 = vset.pattern.permute.xlu0 0
      %1212 = vperm.xlu0 %1211, %v347
      %v1213 = vpop.permute.xlu0 %1212
      %v1215 = vmul.f32 %v1203, %v1208
      %v1216 = vmul.f32 %v1201, %v1208
      %v1217 = vmul.f32 %v1204, %v1213
      %v1218 = vmul.f32 %v1202, %v1213
      %s1219 = scalar_lea.vmem %s2, 34
      %v1220 = vld [vmem:[%s1219] ss:$8 sm:$0x3]
      %v1222 = vlaneseq
      %v1223 = vshrl.u32 %v1222, 7
      %v1224 = vsub.s32 0, %v1223
      %v1225 = vrot.slane %v1220, %v1224
      %v1226 = vlaneseq
      %v1227 = vshrl.u32 %v1226, 7
      %v1228 = vsub.s32 1, %v1227
      %v1229 = vrot.slane %v1220, %v1228
      %v1232 = vmul.f32 %v1215, %v1225
      %v1233 = vmul.f32 %v1216, %v1229
      %v1234 = vmul.f32 %v1217, %v1225
      %v1235 = vmul.f32 %v1218, %v1229
      %v1236 = vadd.f32 %v1188, %v1232
      %v1237 = vadd.f32 %v1189, %v1233
      %v1238 = vadd.f32 %v1190, %v1234
      %v1239 = vadd.f32 %v1191, %v1235
      %1240 = vrot.lane.b32.xlu0 %v306, 48
      %v1241 = vpop.permute.xlu0 %1240
      %1242 = vrot.lane.b32.xlu0 %v308, 48
      %v1243 = vpop.permute.xlu0 %1242
      %1244 = vrot.lane.b32.xlu0 %v307, 48
      %v1245 = vpop.permute.xlu0 %1244
      %1246 = vrot.lane.b32.xlu0 %v309, 48
      %v1247 = vpop.permute.xlu0 %1246
      %vm1248 = vcmp.lt.s32.totalorder %v383, 48
      %v1249 = vsel %vm1248, %v1241, %v1245
      %v1250 = vsel %vm1248, %v1243, %v1247
      %v1251 = vsel %vm1248, %v1245, %v1241
      %v1252 = vsel %vm1248, %v1247, %v1243
      %1254 = vset.pattern.permute.xlu0 0
      %1255 = vperm.xlu0 %1254, %v348
      %v1256 = vpop.permute.xlu0 %1255
      %1259 = vset.pattern.permute.xlu0 0
      %1260 = vperm.xlu0 %1259, %v349
      %v1261 = vpop.permute.xlu0 %1260
      %v1263 = vmul.f32 %v1251, %v1256
      %v1264 = vmul.f32 %v1249, %v1256
      %v1265 = vmul.f32 %v1252, %v1261
      %v1266 = vmul.f32 %v1250, %v1261
      %s1267 = scalar_lea.vmem %s2, 35
      %v1268 = vld [vmem:[%s1267] ss:$8 sm:$0x3]
      %v1270 = vlaneseq
      %v1271 = vshrl.u32 %v1270, 7
      %v1272 = vsub.s32 0, %v1271
      %v1273 = vrot.slane %v1268, %v1272
      %v1274 = vlaneseq
      %v1275 = vshrl.u32 %v1274, 7
      %v1276 = vsub.s32 1, %v1275
      %v1277 = vrot.slane %v1268, %v1276
      %v1280 = vmul.f32 %v1263, %v1273
      %v1281 = vmul.f32 %v1264, %v1277
      %v1282 = vmul.f32 %v1265, %v1273
      %v1283 = vmul.f32 %v1266, %v1277
      %v1284 = vadd.f32 %v1236, %v1280
      %v1285 = vadd.f32 %v1237, %v1281
      %v1286 = vadd.f32 %v1238, %v1282
      %v1287 = vadd.f32 %v1239, %v1283
      %1288 = vrot.lane.b32.xlu0 %v306, 32
      %v1289 = vpop.permute.xlu0 %1288
      %1290 = vrot.lane.b32.xlu0 %v308, 32
      %v1291 = vpop.permute.xlu0 %1290
      %1292 = vrot.lane.b32.xlu0 %v307, 32
      %v1293 = vpop.permute.xlu0 %1292
      %1294 = vrot.lane.b32.xlu0 %v309, 32
      %v1295 = vpop.permute.xlu0 %1294
      %vm1296 = vcmp.lt.s32.totalorder %v383, 32
      %v1297 = vsel %vm1296, %v1289, %v1293
      %v1298 = vsel %vm1296, %v1291, %v1295
      %v1299 = vsel %vm1296, %v1293, %v1289
      %v1300 = vsel %vm1296, %v1295, %v1291
      %1302 = vset.pattern.permute.xlu0 0
      %1303 = vperm.xlu0 %1302, %v350
      %v1304 = vpop.permute.xlu0 %1303
      %1307 = vset.pattern.permute.xlu0 0
      %1308 = vperm.xlu0 %1307, %v351
      %v1309 = vpop.permute.xlu0 %1308
      %v1311 = vmul.f32 %v1299, %v1304
      %v1312 = vmul.f32 %v1297, %v1304
      %v1313 = vmul.f32 %v1300, %v1309
      %v1314 = vmul.f32 %v1298, %v1309
      %s1315 = scalar_lea.vmem %s2, 36
      %v1316 = vld [vmem:[%s1315] ss:$8 sm:$0x3]
      %v1318 = vlaneseq
      %v1319 = vshrl.u32 %v1318, 7
      %v1320 = vsub.s32 0, %v1319
      %v1321 = vrot.slane %v1316, %v1320
      %v1322 = vlaneseq
      %v1323 = vshrl.u32 %v1322, 7
      %v1324 = vsub.s32 1, %v1323
      %v1325 = vrot.slane %v1316, %v1324
      %v1328 = vmul.f32 %v1311, %v1321
      %v1329 = vmul.f32 %v1312, %v1325
      %v1330 = vmul.f32 %v1313, %v1321
      %v1331 = vmul.f32 %v1314, %v1325
      %v1332 = vadd.f32 %v1284, %v1328
      %v1333 = vadd.f32 %v1285, %v1329
      %v1334 = vadd.f32 %v1286, %v1330
      %v1335 = vadd.f32 %v1287, %v1331
      %1336 = vrot.lane.b32.xlu0 %v306, 96
      %v1337 = vpop.permute.xlu0 %1336
      %1338 = vrot.lane.b32.xlu0 %v308, 96
      %v1339 = vpop.permute.xlu0 %1338
      %1340 = vrot.lane.b32.xlu0 %v307, 96
      %v1341 = vpop.permute.xlu0 %1340
      %1342 = vrot.lane.b32.xlu0 %v309, 96
      %v1343 = vpop.permute.xlu0 %1342
      %vm1344 = vcmp.lt.s32.totalorder %v383, 96
      %v1345 = vsel %vm1344, %v1337, %v1341
      %v1346 = vsel %vm1344, %v1339, %v1343
      %v1347 = vsel %vm1344, %v1341, %v1337
      %v1348 = vsel %vm1344, %v1343, %v1339
      %1350 = vset.pattern.permute.xlu0 0
      %1351 = vperm.xlu0 %1350, %v352
      %v1352 = vpop.permute.xlu0 %1351
      %1355 = vset.pattern.permute.xlu0 0
      %1356 = vperm.xlu0 %1355, %v353
      %v1357 = vpop.permute.xlu0 %1356
      %v1359 = vmul.f32 %v1345, %v1352
      %v1360 = vmul.f32 %v1347, %v1352
      %v1361 = vmul.f32 %v1346, %v1357
      %v1362 = vmul.f32 %v1348, %v1357
      %s1363 = scalar_lea.vmem %s2, 37
      %v1364 = vld [vmem:[%s1363] ss:$8 sm:$0x3]
      %v1366 = vlaneseq
      %v1367 = vshrl.u32 %v1366, 7
      %v1368 = vsub.s32 0, %v1367
      %v1369 = vrot.slane %v1364, %v1368
      %v1370 = vlaneseq
      %v1371 = vshrl.u32 %v1370, 7
      %v1372 = vsub.s32 1, %v1371
      %v1373 = vrot.slane %v1364, %v1372
      %v1376 = vmul.f32 %v1359, %v1369
      %v1377 = vmul.f32 %v1360, %v1373
      %v1378 = vmul.f32 %v1361, %v1369
      %v1379 = vmul.f32 %v1362, %v1373
      %v1380 = vadd.f32 %v1332, %v1376
      %v1381 = vadd.f32 %v1333, %v1377
      %v1382 = vadd.f32 %v1334, %v1378
      %v1383 = vadd.f32 %v1335, %v1379
      %1385 = vset.pattern.permute.xlu0 0
      %1386 = vperm.xlu0 %1385, %v354
      %v1387 = vpop.permute.xlu0 %1386
      %1390 = vset.pattern.permute.xlu0 0
      %1391 = vperm.xlu0 %1390, %v355
      %v1392 = vpop.permute.xlu0 %1391
      %v1394 = vmul.f32 %v1153, %v1387
      %v1395 = vmul.f32 %v1155, %v1387
      %v1396 = vmul.f32 %v1154, %v1392
      %v1397 = vmul.f32 %v1156, %v1392
      %s1398 = scalar_lea.vmem %s2, 38
      %v1399 = vld [vmem:[%s1398] ss:$8 sm:$0x3]
      %v1401 = vlaneseq
      %v1402 = vshrl.u32 %v1401, 7
      %v1403 = vsub.s32 0, %v1402
      %v1404 = vrot.slane %v1399, %v1403
      %v1405 = vlaneseq
      %v1406 = vshrl.u32 %v1405, 7
      %v1407 = vsub.s32 1, %v1406
      %v1408 = vrot.slane %v1399, %v1407
      %v1411 = vmul.f32 %v1394, %v1404
      %v1412 = vmul.f32 %v1395, %v1408
      %v1413 = vmul.f32 %v1396, %v1404
      %v1414 = vmul.f32 %v1397, %v1408
      %v1415 = vadd.f32 %v1380, %v1411
      %v1416 = vadd.f32 %v1381, %v1412
      %v1417 = vadd.f32 %v1382, %v1413
      %v1418 = vadd.f32 %v1383, %v1414
      %1420 = vset.pattern.permute.xlu0 0
      %1421 = vperm.xlu0 %1420, %v356
      %v1422 = vpop.permute.xlu0 %1421
      %1425 = vset.pattern.permute.xlu0 0
      %1426 = vperm.xlu0 %1425, %v357
      %v1427 = vpop.permute.xlu0 %1426
      %v1429 = vmul.f32 %v1201, %v1422
      %v1430 = vmul.f32 %v1203, %v1422
      %v1431 = vmul.f32 %v1202, %v1427
      %v1432 = vmul.f32 %v1204, %v1427
      %s1433 = scalar_lea.vmem %s2, 39
      %v1434 = vld [vmem:[%s1433] ss:$8 sm:$0x3]
      %v1436 = vlaneseq
      %v1437 = vshrl.u32 %v1436, 7
      %v1438 = vsub.s32 0, %v1437
      %v1439 = vrot.slane %v1434, %v1438
      %v1440 = vlaneseq
      %v1441 = vshrl.u32 %v1440, 7
      %v1442 = vsub.s32 1, %v1441
      %v1443 = vrot.slane %v1434, %v1442
      %v1446 = vmul.f32 %v1429, %v1439
      %v1447 = vmul.f32 %v1430, %v1443
      %v1448 = vmul.f32 %v1431, %v1439
      %v1449 = vmul.f32 %v1432, %v1443
      %v1450 = vadd.f32 %v1415, %v1446
      %v1451 = vadd.f32 %v1416, %v1447
      %v1452 = vadd.f32 %v1417, %v1448
      %v1453 = vadd.f32 %v1418, %v1449
      %1455 = vset.pattern.permute.xlu0 0
      %1456 = vperm.xlu0 %1455, %v358
      %v1457 = vpop.permute.xlu0 %1456
      %1460 = vset.pattern.permute.xlu0 0
      %1461 = vperm.xlu0 %1460, %v359
      %v1462 = vpop.permute.xlu0 %1461
      %v1464 = vmul.f32 %v1249, %v1457
      %v1465 = vmul.f32 %v1251, %v1457
      %v1466 = vmul.f32 %v1250, %v1462
      %v1467 = vmul.f32 %v1252, %v1462
      %s1468 = scalar_lea.vmem %s2, 48
      %v1469 = vld [vmem:[%s1468] ss:$8 sm:$0x3]
      %v1471 = vlaneseq
      %v1472 = vshrl.u32 %v1471, 7
      %v1473 = vsub.s32 0, %v1472
      %v1474 = vrot.slane %v1469, %v1473
      %v1475 = vlaneseq
      %v1476 = vshrl.u32 %v1475, 7
      %v1477 = vsub.s32 1, %v1476
      %v1478 = vrot.slane %v1469, %v1477
      %v1481 = vmul.f32 %v1464, %v1474
      %v1482 = vmul.f32 %v1465, %v1478
      %v1483 = vmul.f32 %v1466, %v1474
      %v1484 = vmul.f32 %v1467, %v1478
      %v1485 = vadd.f32 %v1450, %v1481
      %v1486 = vadd.f32 %v1451, %v1482
      %v1487 = vadd.f32 %v1452, %v1483
      %v1488 = vadd.f32 %v1453, %v1484
      %1489 = vst [vmem:[#allocation2] sm:$0xff] %v1485
      %1490 = vst [vmem:[#allocation2 + $0x8] sm:$0xff] %v1486
      %1491 = vst [vmem:[#allocation2 + $0x10] sm:$0xff] %v1487
      %1492 = vst [vmem:[#allocation2 + $0x18] sm:$0xff] %v1488
      %v1493 = vld [vmem:[%s3] sm:$0xff]
      %v1494 = vld [vmem:[%s3 + $0x8] sm:$0xff]
      %v1495 = vld [vmem:[%s3 + $0x10] sm:$0xff]
      %v1496 = vld [vmem:[%s3 + $0x18] sm:$0xff]
      %v1497 = vld [vmem:[%s3 + $0x20] sm:$0xff]
      %v1498 = vld [vmem:[%s3 + $0x28] sm:$0xff]
      %v1499 = vld [vmem:[%s3 + $0x30] sm:$0xff]
      %v1500 = vld [vmem:[%s3 + $0x38] sm:$0xff]
      %v1501 = vld [vmem:[%s3 + $0x40] sm:$0xff]
      %v1502 = vld [vmem:[%s3 + $0x48] sm:$0xff]
      %v1503 = vld [vmem:[%s3 + $0x50] sm:$0xff]
      %v1504 = vld [vmem:[%s3 + $0x58] sm:$0xff]
      %v1505 = vld [vmem:[%s3 + $0x60] sm:$0xff]
      %v1506 = vld [vmem:[%s3 + $0x68] sm:$0xff]
      %v1507 = vld [vmem:[%s3 + $0x70] sm:$0xff]
      %v1508 = vld [vmem:[%s3 + $0x78] sm:$0xff]
      %v1509 = vld [vmem:[%s4] sm:$0xff]
      %v1510 = vld [vmem:[%s4 + $0x8] sm:$0xff]
      %v1511 = vld [vmem:[%s4 + $0x10] sm:$0xff]
      %v1512 = vld [vmem:[%s4 + $0x18] sm:$0xff]
      %v1513 = vld [vmem:[%s4 + $0x20] sm:$0xff]
      %v1514 = vld [vmem:[%s4 + $0x28] sm:$0xff]
      %v1515 = vld [vmem:[%s4 + $0x30] sm:$0xff]
      %v1516 = vld [vmem:[%s4 + $0x38] sm:$0xff]
      %v1517 = vld [vmem:[%s4 + $0x40] sm:$0xff]
      %v1518 = vld [vmem:[%s4 + $0x48] sm:$0xff]
      %v1519 = vld [vmem:[%s4 + $0x50] sm:$0xff]
      %v1520 = vld [vmem:[%s4 + $0x58] sm:$0xff]
      %v1521 = vld [vmem:[%s4 + $0x60] sm:$0xff]
      %v1522 = vld [vmem:[%s4 + $0x68] sm:$0xff]
      %v1523 = vld [vmem:[%s4 + $0x70] sm:$0xff]
      %v1524 = vld [vmem:[%s4 + $0x78] sm:$0xff]
      %v1525 = vld [vmem:[%s6] sm:$0xff]
      %v1526 = vld [vmem:[%s6 + $0x8] sm:$0xff]
      %v1527 = vld [vmem:[%s6 + $0x10] sm:$0xff]
      %v1528 = vld [vmem:[%s6 + $0x18] sm:$0xff]
      %v1529 = vld [vmem:[%s5] sm:$0xff]
      %v1530 = vld [vmem:[%s5 + $0x8] sm:$0xff]
      %v1531 = vld [vmem:[%s5 + $0x10] sm:$0xff]
      %v1532 = vld [vmem:[%s5 + $0x18] sm:$0xff]
      %v1533 = vld [vmem:[%s5 + $0x20] sm:$0xff]
      %v1534 = vld [vmem:[%s5 + $0x28] sm:$0xff]
      %v1535 = vld [vmem:[%s5 + $0x30] sm:$0xff]
      %v1536 = vld [vmem:[%s5 + $0x38] sm:$0xff]
      %v1537 = vld [vmem:[%s5 + $0x40] sm:$0xff]
      %v1538 = vld [vmem:[%s5 + $0x48] sm:$0xff]
      %v1539 = vld [vmem:[%s5 + $0x50] sm:$0xff]
      %v1540 = vld [vmem:[%s5 + $0x58] sm:$0xff]
      %v1541 = vld [vmem:[%s5 + $0x60] sm:$0xff]
      %v1542 = vld [vmem:[%s5 + $0x68] sm:$0xff]
      %v1543 = vld [vmem:[%s5 + $0x70] sm:$0xff]
      %v1544 = vld [vmem:[%s5 + $0x78] sm:$0xff]
      %1546 = vset.pattern.permute.xlu0 0
      %1547 = vperm.xlu0 %1546, %v1529
      %v1548 = vpop.permute.xlu0 %1547
      %1551 = vset.pattern.permute.xlu0 0
      %1552 = vperm.xlu0 %1551, %v1530
      %v1553 = vpop.permute.xlu0 %1552
      %1556 = vset.pattern.permute.xlu0 0
      %1557 = vperm.xlu0 %1556, %v1531
      %v1558 = vpop.permute.xlu0 %1557
      %1561 = vset.pattern.permute.xlu0 0
      %1562 = vperm.xlu0 %1561, %v1532
      %v1563 = vpop.permute.xlu0 %1562
      %1566 = vset.pattern.permute.xlu0 0
      %1567 = vperm.xlu0 %1566, %v1533
      %v1568 = vpop.permute.xlu0 %1567
      %1571 = vset.pattern.permute.xlu0 0
      %1572 = vperm.xlu0 %1571, %v1534
      %v1573 = vpop.permute.xlu0 %1572
      %1576 = vset.pattern.permute.xlu0 0
      %1577 = vperm.xlu0 %1576, %v1535
      %v1578 = vpop.permute.xlu0 %1577
      %1581 = vset.pattern.permute.xlu0 0
      %1582 = vperm.xlu0 %1581, %v1536
      %v1583 = vpop.permute.xlu0 %1582
      %1586 = vset.pattern.permute.xlu0 0
      %1587 = vperm.xlu0 %1586, %v1537
      %v1588 = vpop.permute.xlu0 %1587
      %1591 = vset.pattern.permute.xlu0 0
      %1592 = vperm.xlu0 %1591, %v1538
      %v1593 = vpop.permute.xlu0 %1592
      %1596 = vset.pattern.permute.xlu0 0
      %1597 = vperm.xlu0 %1596, %v1539
      %v1598 = vpop.permute.xlu0 %1597
      %1601 = vset.pattern.permute.xlu0 0
      %1602 = vperm.xlu0 %1601, %v1540
      %v1603 = vpop.permute.xlu0 %1602
      %1606 = vset.pattern.permute.xlu0 0
      %1607 = vperm.xlu0 %1606, %v1541
      %v1608 = vpop.permute.xlu0 %1607
      %1611 = vset.pattern.permute.xlu0 0
      %1612 = vperm.xlu0 %1611, %v1542
      %v1613 = vpop.permute.xlu0 %1612
      %1616 = vset.pattern.permute.xlu0 0
      %1617 = vperm.xlu0 %1616, %v1543
      %v1618 = vpop.permute.xlu0 %1617
      %1621 = vset.pattern.permute.xlu0 0
      %1622 = vperm.xlu0 %1621, %v1544
      %v1623 = vpop.permute.xlu0 %1622
      %v1625 = vld [vmem:[%s7] sm:$0xff]
      %v1626 = vld [vmem:[%s7 + $0x8] sm:$0xff]
      %v1627 = vld [vmem:[%s7 + $0x10] sm:$0xff]
      %v1628 = vld [vmem:[%s7 + $0x18] sm:$0xff]
      %1630 = vset.pattern.permute.xlu0 0
      %1631 = vperm.xlu0 %1630, %v1625
      %v1632 = vpop.permute.xlu0 %1631
      %1635 = vset.pattern.permute.xlu0 0
      %1636 = vperm.xlu0 %1635, %v1626
      %v1637 = vpop.permute.xlu0 %1636
      %1640 = vset.pattern.permute.xlu0 0
      %1641 = vperm.xlu0 %1640, %v1627
      %v1642 = vpop.permute.xlu0 %1641
      %1645 = vset.pattern.permute.xlu0 0
      %1646 = vperm.xlu0 %1645, %v1628
      %v1647 = vpop.permute.xlu0 %1646
      %v1649 = vld [vmem:[%s300] sm:$0xff]
      %v1650 = vld [vmem:[%s300 + $0x8] sm:$0xff]
      %v1651 = vld [vmem:[%s300 + $0x10] sm:$0xff]
      %v1652 = vld [vmem:[%s300 + $0x18] sm:$0xff]
      %v1653 = vld [vmem:[%s300 + $0x20] sm:$0xff]
      %v1654 = vld [vmem:[%s300 + $0x28] sm:$0xff]
      %v1655 = vld [vmem:[%s300 + $0x30] sm:$0xff]
      %v1656 = vld [vmem:[%s300 + $0x38] sm:$0xff]
      %v1657 = vld [vmem:[#allocation2] sm:$0xff]
      %v1658 = vld [vmem:[#allocation2 + $0x8] sm:$0xff]
      %v1659 = vld [vmem:[#allocation2 + $0x10] sm:$0xff]
      %v1660 = vld [vmem:[#allocation2 + $0x18] sm:$0xff]
      %vm1661 = vcmask 130048
      %v1663 = vsel %vm1661, %v1509, 0
      %v1666 = vsel %vm1661, %v1510, 0
      %v1669 = vsel %vm1661, %v1511, 0
      %v1672 = vsel %vm1661, %v1512, 0
      %v1675 = vsel %vm1661, %v1513, 0
      %v1678 = vsel %vm1661, %v1514, 0
      %v1681 = vsel %vm1661, %v1515, 0
      %v1684 = vsel %vm1661, %v1516, 0
      %v1687 = vsel %vm1661, %v1517, 0
      %v1690 = vsel %vm1661, %v1518, 0
      %v1693 = vsel %vm1661, %v1519, 0
      %v1696 = vsel %vm1661, %v1520, 0
      %v1699 = vsel %vm1661, %v1521, 0
      %v1702 = vsel %vm1661, %v1522, 0
      %v1705 = vsel %vm1661, %v1523, 0
      %v1708 = vsel %vm1661, %v1524, 0
      %1710 = vmatprep.subr.mxu0 0.0
      %1711 = vmatpush1.msra.mxu0 0.0
      %1712 = vmatprep.subr.mxu0 0.0
      %1713 = vmatpush1.msra.mxu0 0.0
      %1714 = vmatprep.subr.mxu0 0.0
      %1715 = vmatpush1.msra.mxu0 0.0
      %1716 = vmatprep.subr.mxu0 0.0
      %1717 = vmatpush1.msra.mxu0 0.0
      %1718 = vmatprep.subr.mxu0 0.0
      %1719 = vmatpush1.msra.mxu0 0.0
      %1720 = vmatprep.subr.mxu0 0.0
      %1721 = vmatpush1.msra.mxu0 0.0
      %1722 = vmatprep.subr.mxu0 0.0
      %1723 = vmatpush1.msra.mxu0 0.0
      %1724 = vmatprep.subr.mxu0 0.0
      %1725 = vmatpush1.msra.mxu0 0.0
      %1726 = vmatprep.subr.mxu0 0.0
      %1727 = vmatpush1.msra.mxu0 0.0
      %1728 = vmatprep.subr.mxu0 0.0
      %1729 = vmatpush1.msra.mxu0 0.0
      %1730 = vmatprep.subr.mxu0 0.0
      %1731 = vmatpush1.msra.mxu0 0.0
      %1732 = vmatprep.subr.mxu0 0.0
      %1733 = vmatpush1.msra.mxu0 0.0
      %1734 = vmatprep.subr.mxu0 0.0
      %1735 = vmatpush1.msra.mxu0 0.0
      %1736 = vmatprep.subr.mxu0 0.0
      %1737 = vmatpush1.msra.mxu0 0.0
      %1738 = vmatprep.subr.mxu0 %v1660
      %1739 = vmatpush1.msra.mxu0 %v1659
      %1740 = vmatprep.subr.mxu0 %v1658
      %1741 = vmatpush1.msra.mxu0 %v1657
      %1742 = vmatprep.subr.mxu0 0.0
      %1743 = vmatpush2.msra.mxu0 0.0
      %1744 = vmatprep.subr.mxu0 0.0
      %1745 = vmatpush2.msra.mxu0 0.0
      %1746 = vmatprep.subr.mxu0 0.0
      %1747 = vmatpush2.msra.mxu0 0.0
      %1748 = vmatprep.subr.mxu0 0.0
      %1749 = vmatpush2.msra.mxu0 0.0
      %1750 = vmatprep.subr.mxu0 0.0
      %1751 = vmatpush2.msra.mxu0 0.0
      %1752 = vmatprep.subr.mxu0 0.0
      %1753 = vmatpush2.msra.mxu0 0.0
      %1754 = vmatprep.subr.mxu0 0.0
      %1755 = vmatpush2.msra.mxu0 0.0
      %1756 = vmatprep.subr.mxu0 0.0
      %1757 = vmatpush2.msra.mxu0 0.0
      %1758 = vmatprep.subr.mxu0 0.0
      %1759 = vmatpush2.msra.mxu0 0.0
      %1760 = vmatprep.subr.mxu0 0.0
      %1761 = vmatpush2.msra.mxu0 0.0
      %1762 = vmatprep.subr.mxu0 0.0
      %1763 = vmatpush2.msra.mxu0 0.0
      %1764 = vmatprep.subr.mxu0 0.0
      %1765 = vmatpush2.msra.mxu0 0.0
      %1766 = vmatprep.subr.mxu0 0.0
      %1767 = vmatpush2.msra.mxu0 0.0
      %1768 = vmatprep.subr.mxu0 0.0
      %1769 = vmatpush2.msra.mxu0 0.0
      %1770 = vmatprep.subr.mxu0 0.0
      %1771 = vmatpush2.msra.mxu0 0.0
      %1772 = vmatprep.subr.mxu0 0.0
      %1773 = vmatpush2.msra.mxu0 0.0
      %1774 = vmatprep.mubr.f32.mxu0 0.0
      %1775 = vmatmul.mubr.f32.gmra.mxu0 %v1663
      %v1776 = vpop.f32.mrf.mxu0
      %v1777 = vadd.f32 0.0, %v1776
      %v1778 = vpop.f32.mrf.mxu0
      %v1779 = vadd.f32 0.0, %v1778
      %1780 = vmatprep.mubr.f32.mxu0 0.0
      %1781 = vmatmul.mubr.f32.gmra.mxu0 %v1666
      %v1782 = vpop.f32.mrf.mxu0
      %v1783 = vadd.f32 0.0, %v1782
      %v1784 = vpop.f32.mrf.mxu0
      %v1785 = vadd.f32 0.0, %v1784
      %1786 = vmatprep.mubr.f32.mxu0 0.0
      %1787 = vmatmul.mubr.f32.gmra.mxu0 %v1669
      %v1788 = vpop.f32.mrf.mxu0
      %v1789 = vadd.f32 0.0, %v1788
      %v1790 = vpop.f32.mrf.mxu0
      %v1791 = vadd.f32 0.0, %v1790
      %1792 = vmatprep.mubr.f32.mxu0 0.0
      %1793 = vmatmul.mubr.f32.gmra.mxu0 %v1672
      %v1794 = vpop.f32.mrf.mxu0
      %v1795 = vadd.f32 0.0, %v1794
      %v1796 = vpop.f32.mrf.mxu0
      %v1797 = vadd.f32 0.0, %v1796
      %1798 = vmatprep.mubr.f32.mxu0 0.0
      %1799 = vmatmul.mubr.f32.gmra.mxu0 %v1675
      %v1800 = vpop.f32.mrf.mxu0
      %v1801 = vadd.f32 0.0, %v1800
      %v1802 = vpop.f32.mrf.mxu0
      %v1803 = vadd.f32 0.0, %v1802
      %1804 = vmatprep.mubr.f32.mxu0 0.0
      %1805 = vmatmul.mubr.f32.gmra.mxu0 %v1678
      %v1806 = vpop.f32.mrf.mxu0
      %v1807 = vadd.f32 0.0, %v1806
      %v1808 = vpop.f32.mrf.mxu0
      %v1809 = vadd.f32 0.0, %v1808
      %1810 = vmatprep.mubr.f32.mxu0 0.0
      %1811 = vmatmul.mubr.f32.gmra.mxu0 %v1681
      %v1812 = vpop.f32.mrf.mxu0
      %v1813 = vadd.f32 0.0, %v1812
      %v1814 = vpop.f32.mrf.mxu0
      %v1815 = vadd.f32 0.0, %v1814
      %1816 = vmatprep.mubr.f32.mxu0 0.0
      %1817 = vmatmul.mubr.f32.gmra.mxu0 %v1684
      %v1818 = vpop.f32.mrf.mxu0
      %v1819 = vadd.f32 0.0, %v1818
      %v1820 = vpop.f32.mrf.mxu0
      %v1821 = vadd.f32 0.0, %v1820
      %1822 = vmatprep.mubr.f32.mxu0 0.0
      %1823 = vmatmul.mubr.f32.gmra.mxu0 %v1687
      %v1824 = vpop.f32.mrf.mxu0
      %v1825 = vadd.f32 0.0, %v1824
      %v1826 = vpop.f32.mrf.mxu0
      %v1827 = vadd.f32 0.0, %v1826
      %1828 = vmatprep.mubr.f32.mxu0 0.0
      %1829 = vmatmul.mubr.f32.gmra.mxu0 %v1690
      %v1830 = vpop.f32.mrf.mxu0
      %v1831 = vadd.f32 0.0, %v1830
      %v1832 = vpop.f32.mrf.mxu0
      %v1833 = vadd.f32 0.0, %v1832
      %1834 = vmatprep.mubr.f32.mxu0 0.0
      %1835 = vmatmul.mubr.f32.gmra.mxu0 %v1693
      %v1836 = vpop.f32.mrf.mxu0
      %v1837 = vadd.f32 0.0, %v1836
      %v1838 = vpop.f32.mrf.mxu0
      %v1839 = vadd.f32 0.0, %v1838
      %1840 = vmatprep.mubr.f32.mxu0 0.0
      %1841 = vmatmul.mubr.f32.gmra.mxu0 %v1696
      %v1842 = vpop.f32.mrf.mxu0
      %v1843 = vadd.f32 0.0, %v1842
      %v1844 = vpop.f32.mrf.mxu0
      %v1845 = vadd.f32 0.0, %v1844
      %1846 = vmatprep.mubr.f32.mxu0 0.0
      %1847 = vmatmul.mubr.f32.gmra.mxu0 %v1699
      %v1848 = vpop.f32.mrf.mxu0
      %v1849 = vadd.f32 0.0, %v1848
      %v1850 = vpop.f32.mrf.mxu0
      %v1851 = vadd.f32 0.0, %v1850
      %1852 = vmatprep.mubr.f32.mxu0 0.0
      %1853 = vmatmul.mubr.f32.gmra.mxu0 %v1702
      %v1854 = vpop.f32.mrf.mxu0
      %v1855 = vadd.f32 0.0, %v1854
      %v1856 = vpop.f32.mrf.mxu0
      %v1857 = vadd.f32 0.0, %v1856
      %1858 = vmatprep.mubr.f32.mxu0 0.0
      %1859 = vmatmul.mubr.f32.gmra.mxu0 %v1705
      %v1860 = vpop.f32.mrf.mxu0
      %v1861 = vadd.f32 0.0, %v1860
      %v1862 = vpop.f32.mrf.mxu0
      %v1863 = vadd.f32 0.0, %v1862
      %1864 = vmatprep.mubr.f32.mxu0 0.0
      %1865 = vmatmul.mubr.f32.gmra.mxu0 %v1708
      %v1866 = vpop.f32.mrf.mxu0
      %v1867 = vadd.f32 0.0, %v1866
      %v1868 = vpop.f32.mrf.mxu0
      %v1869 = vadd.f32 0.0, %v1868
      %1870 = vdwg.mxu0
      %v1872 = vsel %vm1661, %v1493, 0
      %v1875 = vsel %vm1661, %v1494, 0
      %v1878 = vsel %vm1661, %v1495, 0
      %v1881 = vsel %vm1661, %v1496, 0
      %v1884 = vsel %vm1661, %v1497, 0
      %v1887 = vsel %vm1661, %v1498, 0
      %v1890 = vsel %vm1661, %v1499, 0
      %v1893 = vsel %vm1661, %v1500, 0
      %v1896 = vsel %vm1661, %v1501, 0
      %v1899 = vsel %vm1661, %v1502, 0
      %v1902 = vsel %vm1661, %v1503, 0
      %v1905 = vsel %vm1661, %v1504, 0
      %v1908 = vsel %vm1661, %v1505, 0
      %v1911 = vsel %vm1661, %v1506, 0
      %v1914 = vsel %vm1661, %v1507, 0
      %v1917 = vsel %vm1661, %v1508, 0
      %1919 = vmatprep.subr.mxu0 0.0
      %1920 = vmatpush1.msra.mxu0 0.0
      %1921 = vmatprep.subr.mxu0 0.0
      %1922 = vmatpush1.msra.mxu0 0.0
      %1923 = vmatprep.subr.mxu0 0.0
      %1924 = vmatpush1.msra.mxu0 0.0
      %1925 = vmatprep.subr.mxu0 0.0
      %1926 = vmatpush1.msra.mxu0 0.0
      %1927 = vmatprep.subr.mxu0 0.0
      %1928 = vmatpush1.msra.mxu0 0.0
      %1929 = vmatprep.subr.mxu0 0.0
      %1930 = vmatpush1.msra.mxu0 0.0
      %1931 = vmatprep.subr.mxu0 0.0
      %1932 = vmatpush1.msra.mxu0 0.0
      %1933 = vmatprep.subr.mxu0 0.0
      %1934 = vmatpush1.msra.mxu0 0.0
      %1935 = vmatprep.subr.mxu0 0.0
      %1936 = vmatpush1.msra.mxu0 0.0
      %1937 = vmatprep.subr.mxu0 0.0
      %1938 = vmatpush1.msra.mxu0 0.0
      %1939 = vmatprep.subr.mxu0 0.0
      %1940 = vmatpush1.msra.mxu0 0.0
      %1941 = vmatprep.subr.mxu0 0.0
      %1942 = vmatpush1.msra.mxu0 0.0
      %1943 = vmatprep.subr.mxu0 0.0
      %1944 = vmatpush1.msra.mxu0 0.0
      %1945 = vmatprep.subr.mxu0 0.0
      %1946 = vmatpush1.msra.mxu0 0.0
      %1947 = vmatprep.subr.mxu0 %v1652
      %1948 = vmatpush1.msra.mxu0 %v1651
      %1949 = vmatprep.subr.mxu0 %v1650
      %1950 = vmatpush1.msra.mxu0 %v1649
      %1951 = vmatprep.subr.mxu0 0.0
      %1952 = vmatpush2.msra.mxu0 0.0
      %1953 = vmatprep.subr.mxu0 0.0
      %1954 = vmatpush2.msra.mxu0 0.0
      %1955 = vmatprep.subr.mxu0 0.0
      %1956 = vmatpush2.msra.mxu0 0.0
      %1957 = vmatprep.subr.mxu0 0.0
      %1958 = vmatpush2.msra.mxu0 0.0
      %1959 = vmatprep.subr.mxu0 0.0
      %1960 = vmatpush2.msra.mxu0 0.0
      %1961 = vmatprep.subr.mxu0 0.0
      %1962 = vmatpush2.msra.mxu0 0.0
      %1963 = vmatprep.subr.mxu0 0.0
      %1964 = vmatpush2.msra.mxu0 0.0
      %1965 = vmatprep.subr.mxu0 0.0
      %1966 = vmatpush2.msra.mxu0 0.0
      %1967 = vmatprep.subr.mxu0 0.0
      %1968 = vmatpush2.msra.mxu0 0.0
      %1969 = vmatprep.subr.mxu0 0.0
      %1970 = vmatpush2.msra.mxu0 0.0
      %1971 = vmatprep.subr.mxu0 0.0
      %1972 = vmatpush2.msra.mxu0 0.0
      %1973 = vmatprep.subr.mxu0 0.0
      %1974 = vmatpush2.msra.mxu0 0.0
      %1975 = vmatprep.subr.mxu0 0.0
      %1976 = vmatpush2.msra.mxu0 0.0
      %1977 = vmatprep.subr.mxu0 0.0
      %1978 = vmatpush2.msra.mxu0 0.0
      %1979 = vmatprep.subr.mxu0 0.0
      %1980 = vmatpush2.msra.mxu0 0.0
      %1981 = vmatprep.subr.mxu0 0.0
      %1982 = vmatpush2.msra.mxu0 0.0
      %1983 = vmatprep.mubr.f32.mxu0 0.0
      %1984 = vmatmul.mubr.f32.gmra.mxu0 %v1872
      %v1985 = vpop.f32.mrf.mxu0
      %v1986 = vadd.f32 %v1777, %v1985
      %v1987 = vpop.f32.mrf.mxu0
      %v1988 = vadd.f32 %v1779, %v1987
      %1989 = vmatprep.mubr.f32.mxu0 0.0
      %1990 = vmatmul.mubr.f32.gmra.mxu0 %v1875
      %v1991 = vpop.f32.mrf.mxu0
      %v1992 = vadd.f32 %v1783, %v1991
      %v1993 = vpop.f32.mrf.mxu0
      %v1994 = vadd.f32 %v1785, %v1993
      %1995 = vmatprep.mubr.f32.mxu0 0.0
      %1996 = vmatmul.mubr.f32.gmra.mxu0 %v1878
      %v1997 = vpop.f32.mrf.mxu0
      %v1998 = vadd.f32 %v1789, %v1997
      %v1999 = vpop.f32.mrf.mxu0
      %v2000 = vadd.f32 %v1791, %v1999
      %2001 = vmatprep.mubr.f32.mxu0 0.0
      %2002 = vmatmul.mubr.f32.gmra.mxu0 %v1881
      %v2003 = vpop.f32.mrf.mxu0
      %v2004 = vadd.f32 %v1795, %v2003
      %v2005 = vpop.f32.mrf.mxu0
      %v2006 = vadd.f32 %v1797, %v2005
      %2007 = vmatprep.mubr.f32.mxu0 0.0
      %2008 = vmatmul.mubr.f32.gmra.mxu0 %v1884
      %v2009 = vpop.f32.mrf.mxu0
      %v2010 = vadd.f32 %v1801, %v2009
      %v2011 = vpop.f32.mrf.mxu0
      %v2012 = vadd.f32 %v1803, %v2011
      %2013 = vmatprep.mubr.f32.mxu0 0.0
      %2014 = vmatmul.mubr.f32.gmra.mxu0 %v1887
      %v2015 = vpop.f32.mrf.mxu0
      %v2016 = vadd.f32 %v1807, %v2015
      %v2017 = vpop.f32.mrf.mxu0
      %v2018 = vadd.f32 %v1809, %v2017
      %2019 = vmatprep.mubr.f32.mxu0 0.0
      %2020 = vmatmul.mubr.f32.gmra.mxu0 %v1890
      %v2021 = vpop.f32.mrf.mxu0
      %v2022 = vadd.f32 %v1813, %v2021
      %v2023 = vpop.f32.mrf.mxu0
      %v2024 = vadd.f32 %v1815, %v2023
      %2025 = vmatprep.mubr.f32.mxu0 0.0
      %2026 = vmatmul.mubr.f32.gmra.mxu0 %v1893
      %v2027 = vpop.f32.mrf.mxu0
      %v2028 = vadd.f32 %v1819, %v2027
      %v2029 = vpop.f32.mrf.mxu0
      %v2030 = vadd.f32 %v1821, %v2029
      %2031 = vmatprep.mubr.f32.mxu0 0.0
      %2032 = vmatmul.mubr.f32.gmra.mxu0 %v1896
      %v2033 = vpop.f32.mrf.mxu0
      %v2034 = vadd.f32 %v1825, %v2033
      %v2035 = vpop.f32.mrf.mxu0
      %v2036 = vadd.f32 %v1827, %v2035
      %2037 = vmatprep.mubr.f32.mxu0 0.0
      %2038 = vmatmul.mubr.f32.gmra.mxu0 %v1899
      %v2039 = vpop.f32.mrf.mxu0
      %v2040 = vadd.f32 %v1831, %v2039
      %v2041 = vpop.f32.mrf.mxu0
      %v2042 = vadd.f32 %v1833, %v2041
      %2043 = vmatprep.mubr.f32.mxu0 0.0
      %2044 = vmatmul.mubr.f32.gmra.mxu0 %v1902
      %v2045 = vpop.f32.mrf.mxu0
      %v2046 = vadd.f32 %v1837, %v2045
      %v2047 = vpop.f32.mrf.mxu0
      %v2048 = vadd.f32 %v1839, %v2047
      %2049 = vmatprep.mubr.f32.mxu0 0.0
      %2050 = vmatmul.mubr.f32.gmra.mxu0 %v1905
      %v2051 = vpop.f32.mrf.mxu0
      %v2052 = vadd.f32 %v1843, %v2051
      %v2053 = vpop.f32.mrf.mxu0
      %v2054 = vadd.f32 %v1845, %v2053
      %2055 = vmatprep.mubr.f32.mxu0 0.0
      %2056 = vmatmul.mubr.f32.gmra.mxu0 %v1908
      %v2057 = vpop.f32.mrf.mxu0
      %v2058 = vadd.f32 %v1849, %v2057
      %v2059 = vpop.f32.mrf.mxu0
      %v2060 = vadd.f32 %v1851, %v2059
      %2061 = vmatprep.mubr.f32.mxu0 0.0
      %2062 = vmatmul.mubr.f32.gmra.mxu0 %v1911
      %v2063 = vpop.f32.mrf.mxu0
      %v2064 = vadd.f32 %v1855, %v2063
      %v2065 = vpop.f32.mrf.mxu0
      %v2066 = vadd.f32 %v1857, %v2065
      %2067 = vmatprep.mubr.f32.mxu0 0.0
      %2068 = vmatmul.mubr.f32.gmra.mxu0 %v1914
      %v2069 = vpop.f32.mrf.mxu0
      %v2070 = vadd.f32 %v1861, %v2069
      %v2071 = vpop.f32.mrf.mxu0
      %v2072 = vadd.f32 %v1863, %v2071
      %2073 = vmatprep.mubr.f32.mxu0 0.0
      %2074 = vmatmul.mubr.f32.gmra.mxu0 %v1917
      %v2075 = vpop.f32.mrf.mxu0
      %v2076 = vadd.f32 %v1867, %v2075
      %v2077 = vpop.f32.mrf.mxu0
      %v2078 = vadd.f32 %v1869, %v2077
      %2079 = vdwg.mxu0
      %v2080 = vadd.f32 %v1986, %v1548
      %v2081 = vadd.f32 %v1988, %v1548
      %v2082 = vadd.f32 %v1992, %v1553
      %v2083 = vadd.f32 %v1994, %v1553
      %v2084 = vadd.f32 %v1998, %v1558
      %v2085 = vadd.f32 %v2000, %v1558
      %v2086 = vadd.f32 %v2004, %v1563
      %v2087 = vadd.f32 %v2006, %v1563
      %v2088 = vadd.f32 %v2010, %v1568
      %v2089 = vadd.f32 %v2012, %v1568
      %v2090 = vadd.f32 %v2016, %v1573
      %v2091 = vadd.f32 %v2018, %v1573
      %v2092 = vadd.f32 %v2022, %v1578
      %v2093 = vadd.f32 %v2024, %v1578
      %v2094 = vadd.f32 %v2028, %v1583
      %v2095 = vadd.f32 %v2030, %v1583
      %v2096 = vadd.f32 %v2034, %v1588
      %v2097 = vadd.f32 %v2036, %v1588
      %v2098 = vadd.f32 %v2040, %v1593
      %v2099 = vadd.f32 %v2042, %v1593
      %v2100 = vadd.f32 %v2046, %v1598
      %v2101 = vadd.f32 %v2048, %v1598
      %v2102 = vadd.f32 %v2052, %v1603
      %v2103 = vadd.f32 %v2054, %v1603
      %v2104 = vadd.f32 %v2058, %v1608
      %v2105 = vadd.f32 %v2060, %v1608
      %v2106 = vadd.f32 %v2064, %v1613
      %v2107 = vadd.f32 %v2066, %v1613
      %v2108 = vadd.f32 %v2070, %v1618
      %v2109 = vadd.f32 %v2072, %v1618
      %v2110 = vadd.f32 %v2076, %v1623
      %v2111 = vadd.f32 %v2078, %v1623
      %v2112 = vmul.f32 %v2080, 0.5
      %v2113 = vmul.f32 %v2081, 0.5
      %v2114 = vmul.f32 %v2082, 0.5
      %v2115 = vmul.f32 %v2083, 0.5
      %v2116 = vmul.f32 %v2084, 0.5
      %v2117 = vmul.f32 %v2085, 0.5
      %v2118 = vmul.f32 %v2086, 0.5
      %v2119 = vmul.f32 %v2087, 0.5
      %v2120 = vmul.f32 %v2088, 0.5
      %v2121 = vmul.f32 %v2089, 0.5
      %v2122 = vmul.f32 %v2090, 0.5
      %v2123 = vmul.f32 %v2091, 0.5
      %v2124 = vmul.f32 %v2092, 0.5
      %v2125 = vmul.f32 %v2093, 0.5
      %v2126 = vmul.f32 %v2094, 0.5
      %v2127 = vmul.f32 %v2095, 0.5
      %v2128 = vmul.f32 %v2096, 0.5
      %v2129 = vmul.f32 %v2097, 0.5
      %v2130 = vmul.f32 %v2098, 0.5
      %v2131 = vmul.f32 %v2099, 0.5
      %v2132 = vmul.f32 %v2100, 0.5
      %v2133 = vmul.f32 %v2101, 0.5
      %v2134 = vmul.f32 %v2102, 0.5
      %v2135 = vmul.f32 %v2103, 0.5
      %v2136 = vmul.f32 %v2104, 0.5
      %v2137 = vmul.f32 %v2105, 0.5
      %v2138 = vmul.f32 %v2106, 0.5
      %v2139 = vmul.f32 %v2107, 0.5
      %v2140 = vmul.f32 %v2108, 0.5
      %v2141 = vmul.f32 %v2109, 0.5
      %v2142 = vmul.f32 %v2110, 0.5
      %v2143 = vmul.f32 %v2111, 0.5
      %v2144 = vmul.f32 %v2080, 0.70710677
      %v2145 = vmul.f32 %v2081, 0.70710677
      %v2146 = vmul.f32 %v2082, 0.70710677
      %v2147 = vmul.f32 %v2083, 0.70710677
      %v2148 = vmul.f32 %v2084, 0.70710677
      %v2149 = vmul.f32 %v2085, 0.70710677
      %v2150 = vmul.f32 %v2086, 0.70710677
      %v2151 = vmul.f32 %v2087, 0.70710677
      %v2152 = vmul.f32 %v2088, 0.70710677
      %v2153 = vmul.f32 %v2089, 0.70710677
      %v2154 = vmul.f32 %v2090, 0.70710677
      %v2155 = vmul.f32 %v2091, 0.70710677
      %v2156 = vmul.f32 %v2092, 0.70710677
      %v2157 = vmul.f32 %v2093, 0.70710677
      %v2158 = vmul.f32 %v2094, 0.70710677
      %v2159 = vmul.f32 %v2095, 0.70710677
      %v2160 = vmul.f32 %v2096, 0.70710677
      %v2161 = vmul.f32 %v2097, 0.70710677
      %v2162 = vmul.f32 %v2098, 0.70710677
      %v2163 = vmul.f32 %v2099, 0.70710677
      %v2164 = vmul.f32 %v2100, 0.70710677
      %v2165 = vmul.f32 %v2101, 0.70710677
      %v2166 = vmul.f32 %v2102, 0.70710677
      %v2167 = vmul.f32 %v2103, 0.70710677
      %v2168 = vmul.f32 %v2104, 0.70710677
      %v2169 = vmul.f32 %v2105, 0.70710677
      %v2170 = vmul.f32 %v2106, 0.70710677
      %v2171 = vmul.f32 %v2107, 0.70710677
      %v2172 = vmul.f32 %v2108, 0.70710677
      %v2173 = vmul.f32 %v2109, 0.70710677
      %v2174 = vmul.f32 %v2110, 0.70710677
      %v2175 = vmul.f32 %v2111, 0.70710677
      %v2176 = verf.f32.pop %v2144
      %v2177 = verf.f32.pop %v2145
      %v2178 = verf.f32.pop %v2146
      %v2179 = verf.f32.pop %v2147
      %v2180 = verf.f32.pop %v2148
      %v2181 = verf.f32.pop %v2149
      %v2182 = verf.f32.pop %v2150
      %v2183 = verf.f32.pop %v2151
      %v2184 = verf.f32.pop %v2152
      %v2185 = verf.f32.pop %v2153
      %v2186 = verf.f32.pop %v2154
      %v2187 = verf.f32.pop %v2155
      %v2188 = verf.f32.pop %v2156
      %v2189 = verf.f32.pop %v2157
      %v2190 = verf.f32.pop %v2158
      %v2191 = verf.f32.pop %v2159
      %v2192 = verf.f32.pop %v2160
      %v2193 = verf.f32.pop %v2161
      %v2194 = verf.f32.pop %v2162
      %v2195 = verf.f32.pop %v2163
      %v2196 = verf.f32.pop %v2164
      %v2197 = verf.f32.pop %v2165
      %v2198 = verf.f32.pop %v2166
      %v2199 = verf.f32.pop %v2167
      %v2200 = verf.f32.pop %v2168
      %v2201 = verf.f32.pop %v2169
      %v2202 = verf.f32.pop %v2170
      %v2203 = verf.f32.pop %v2171
      %v2204 = verf.f32.pop %v2172
      %v2205 = verf.f32.pop %v2173
      %v2206 = verf.f32.pop %v2174
      %v2207 = verf.f32.pop %v2175
      %v2208 = vadd.f32 %v2176, 1.0
      %v2209 = vadd.f32 %v2177, 1.0
      %v2210 = vadd.f32 %v2178, 1.0
      %v2211 = vadd.f32 %v2179, 1.0
      %v2212 = vadd.f32 %v2180, 1.0
      %v2213 = vadd.f32 %v2181, 1.0
      %v2214 = vadd.f32 %v2182, 1.0
      %v2215 = vadd.f32 %v2183, 1.0
      %v2216 = vadd.f32 %v2184, 1.0
      %v2217 = vadd.f32 %v2185, 1.0
      %v2218 = vadd.f32 %v2186, 1.0
      %v2219 = vadd.f32 %v2187, 1.0
      %v2220 = vadd.f32 %v2188, 1.0
      %v2221 = vadd.f32 %v2189, 1.0
      %v2222 = vadd.f32 %v2190, 1.0
      %v2223 = vadd.f32 %v2191, 1.0
      %v2224 = vadd.f32 %v2192, 1.0
      %v2225 = vadd.f32 %v2193, 1.0
      %v2226 = vadd.f32 %v2194, 1.0
      %v2227 = vadd.f32 %v2195, 1.0
      %v2228 = vadd.f32 %v2196, 1.0
      %v2229 = vadd.f32 %v2197, 1.0
      %v2230 = vadd.f32 %v2198, 1.0
      %v2231 = vadd.f32 %v2199, 1.0
      %v2232 = vadd.f32 %v2200, 1.0
      %v2233 = vadd.f32 %v2201, 1.0
      %v2234 = vadd.f32 %v2202, 1.0
      %v2235 = vadd.f32 %v2203, 1.0
      %v2236 = vadd.f32 %v2204, 1.0
      %v2237 = vadd.f32 %v2205, 1.0
      %v2238 = vadd.f32 %v2206, 1.0
      %v2239 = vadd.f32 %v2207, 1.0
      %v2240 = vmul.f32 %v2112, %v2208
      %v2241 = vmul.f32 %v2113, %v2209
      %v2242 = vmul.f32 %v2114, %v2210
      %v2243 = vmul.f32 %v2115, %v2211
      %v2244 = vmul.f32 %v2116, %v2212
      %v2245 = vmul.f32 %v2117, %v2213
      %v2246 = vmul.f32 %v2118, %v2214
      %v2247 = vmul.f32 %v2119, %v2215
      %v2248 = vmul.f32 %v2120, %v2216
      %v2249 = vmul.f32 %v2121, %v2217
      %v2250 = vmul.f32 %v2122, %v2218
      %v2251 = vmul.f32 %v2123, %v2219
      %v2252 = vmul.f32 %v2124, %v2220
      %v2253 = vmul.f32 %v2125, %v2221
      %v2254 = vmul.f32 %v2126, %v2222
      %v2255 = vmul.f32 %v2127, %v2223
      %v2256 = vmul.f32 %v2128, %v2224
      %v2257 = vmul.f32 %v2129, %v2225
      %v2258 = vmul.f32 %v2130, %v2226
      %v2259 = vmul.f32 %v2131, %v2227
      %v2260 = vmul.f32 %v2132, %v2228
      %v2261 = vmul.f32 %v2133, %v2229
      %v2262 = vmul.f32 %v2134, %v2230
      %v2263 = vmul.f32 %v2135, %v2231
      %v2264 = vmul.f32 %v2136, %v2232
      %v2265 = vmul.f32 %v2137, %v2233
      %v2266 = vmul.f32 %v2138, %v2234
      %v2267 = vmul.f32 %v2139, %v2235
      %v2268 = vmul.f32 %v2140, %v2236
      %v2269 = vmul.f32 %v2141, %v2237
      %v2270 = vmul.f32 %v2142, %v2238
      %v2271 = vmul.f32 %v2143, %v2239
      %2272 = vmatprep.subr.mxu0 %v2271
      %2273 = vmatpush1.msra.mxu0 %v2270
      %2274 = vmatprep.subr.mxu0 %v2269
      %2275 = vmatpush1.msra.mxu0 %v2268
      %2276 = vmatprep.subr.mxu0 %v2267
      %2277 = vmatpush1.msra.mxu0 %v2266
      %2278 = vmatprep.subr.mxu0 %v2265
      %2279 = vmatpush1.msra.mxu0 %v2264
      %2280 = vmatprep.subr.mxu0 %v2263
      %2281 = vmatpush1.msra.mxu0 %v2262
      %2282 = vmatprep.subr.mxu0 %v2261
      %2283 = vmatpush1.msra.mxu0 %v2260
      %2284 = vmatprep.subr.mxu0 %v2259
      %2285 = vmatpush1.msra.mxu0 %v2258
      %2286 = vmatprep.subr.mxu0 %v2257
      %2287 = vmatpush1.msra.mxu0 %v2256
      %2288 = vmatprep.subr.mxu0 %v2255
      %2289 = vmatpush1.msra.mxu0 %v2254
      %2290 = vmatprep.subr.mxu0 %v2253
      %2291 = vmatpush1.msra.mxu0 %v2252
      %2292 = vmatprep.subr.mxu0 %v2251
      %2293 = vmatpush1.msra.mxu0 %v2250
      %2294 = vmatprep.subr.mxu0 %v2249
      %2295 = vmatpush1.msra.mxu0 %v2248
      %2296 = vmatprep.subr.mxu0 %v2247
      %2297 = vmatpush1.msra.mxu0 %v2246
      %2298 = vmatprep.subr.mxu0 %v2245
      %2299 = vmatpush1.msra.mxu0 %v2244
      %2300 = vmatprep.subr.mxu0 %v2243
      %2301 = vmatpush1.msra.mxu0 %v2242
      %2302 = vmatprep.subr.mxu0 %v2241
      %2303 = vmatpush1.msra.mxu0 %v2240
      %2304 = vmatprep.subr.mxu0 0.0
      %2305 = vmatpush2.msra.mxu0 0.0
      %2306 = vmatprep.subr.mxu0 0.0
      %2307 = vmatpush2.msra.mxu0 0.0
      %2308 = vmatprep.subr.mxu0 0.0
      %2309 = vmatpush2.msra.mxu0 0.0
      %2310 = vmatprep.subr.mxu0 0.0
      %2311 = vmatpush2.msra.mxu0 0.0
      %2312 = vmatprep.subr.mxu0 0.0
      %2313 = vmatpush2.msra.mxu0 0.0
      %2314 = vmatprep.subr.mxu0 0.0
      %2315 = vmatpush2.msra.mxu0 0.0
      %2316 = vmatprep.subr.mxu0 0.0
      %2317 = vmatpush2.msra.mxu0 0.0
      %2318 = vmatprep.subr.mxu0 0.0
      %2319 = vmatpush2.msra.mxu0 0.0
      %2320 = vmatprep.subr.mxu0 0.0
      %2321 = vmatpush2.msra.mxu0 0.0
      %2322 = vmatprep.subr.mxu0 0.0
      %2323 = vmatpush2.msra.mxu0 0.0
      %2324 = vmatprep.subr.mxu0 0.0
      %2325 = vmatpush2.msra.mxu0 0.0
      %2326 = vmatprep.subr.mxu0 0.0
      %2327 = vmatpush2.msra.mxu0 0.0
      %2328 = vmatprep.subr.mxu0 0.0
      %2329 = vmatpush2.msra.mxu0 0.0
      %2330 = vmatprep.subr.mxu0 0.0
      %2331 = vmatpush2.msra.mxu0 0.0
      %2332 = vmatprep.subr.mxu0 0.0
      %2333 = vmatpush2.msra.mxu0 0.0
      %2334 = vmatprep.subr.mxu0 0.0
      %2335 = vmatpush2.msra.mxu0 0.0
      %2336 = vmatprep.mubr.f32.mxu0 0.0
      %2337 = vmatmul.mubr.f32.gmra.mxu0 %v1525
      %v2338 = vpop.f32.mrf.mxu0
      %v2339 = vadd.f32 %v1632, %v2338
      %v2340 = vpop.f32.mrf.mxu0
      %v2341 = vadd.f32 %v1632, %v2340
      %2342 = vmatprep.mubr.f32.mxu0 0.0
      %2343 = vmatmul.mubr.f32.gmra.mxu0 %v1526
      %v2344 = vpop.f32.mrf.mxu0
      %v2345 = vadd.f32 %v1637, %v2344
      %v2346 = vpop.f32.mrf.mxu0
      %v2347 = vadd.f32 %v1637, %v2346
      %2348 = vmatprep.mubr.f32.mxu0 0.0
      %2349 = vmatmul.mubr.f32.gmra.mxu0 %v1527
      %v2350 = vpop.f32.mrf.mxu0
      %v2351 = vadd.f32 %v1642, %v2350
      %v2352 = vpop.f32.mrf.mxu0
      %v2353 = vadd.f32 %v1642, %v2352
      %2354 = vmatprep.mubr.f32.mxu0 0.0
      %2355 = vmatmul.mubr.f32.gmra.mxu0 %v1528
      %v2356 = vpop.f32.mrf.mxu0
      %v2357 = vadd.f32 %v1647, %v2356
      %v2358 = vpop.f32.mrf.mxu0
      %v2359 = vadd.f32 %v1647, %v2358
      %2360 = vdwg.mxu0
      %v2361 = vadd.f32 %v1649, %v2339
      %v2362 = vadd.f32 %v1650, %v2341
      %v2363 = vadd.f32 %v1651, %v2345
      %v2364 = vadd.f32 %v1652, %v2347
      %v2365 = vadd.f32 %v1653, %v2351
      %v2366 = vadd.f32 %v1654, %v2353
      %v2367 = vadd.f32 %v1655, %v2357
      %v2368 = vadd.f32 %v1656, %v2359
      %2369 = vst [vmem:[%s305] sm:$0xff] %v2361
      %2370 = vst [vmem:[%s305 + $0x8] sm:$0xff] %v2362
      %2371 = vst [vmem:[%s305 + $0x10] sm:$0xff] %v2363
      %2372 = vst [vmem:[%s305 + $0x18] sm:$0xff] %v2364
      %2373 = vst [vmem:[%s305 + $0x20] sm:$0xff] %v2365
      %2374 = vst [vmem:[%s305 + $0x28] sm:$0xff] %v2366
      %2375 = vst [vmem:[%s305 + $0x30] sm:$0xff] %v2367
      %2376 = vst [vmem:[%s305 + $0x38] sm:$0xff] %v2368
      %p2377 = scmp.lt.s32.totalorder %s19, 1
      %s2378 = scalar_select %p2377, %s19, 1
      %s2379 = smul.addr %s2378, 8
      %s2380 = smul.addr %s2379, 8
      %s2381 = scalar_lea.vmem %s8, %s2380
      // Predicated region
      $region53: #{metanext_block.1} parent=51 // pred_check
        %p2382 = pneg %p210
      $region54: #{metanext_block.1} parent=51 // pred_check_branch
        %2384 = sbr.rel (%p2382) target = $region56
      $region55: #{metanext_block.1} parent=51 // pred_region
        _
      $region56: #{metanext_block.1} parent=51 // pred_fallthru
        _
    $region52: #{metanext_block.1} parent=5 // pred_fallthru
      _
    %p2385 = scmp.le.s32.totalorder 2, %s14
    // Predicated region
    $region57: #{metanext_block.1} parent=5 // pred_check
      %p2386 = pneg %p2385
    $region58: #{metanext_block.1} parent=5 // pred_check_branch
      %2388 = sbr.rel (%p2386) target = $region60
    $region59: #{metanext_block.1} parent=5 // pred_region
      %s2389 = ssub.s32 %s14, 2
      // Predicated region
      $region61: #{metanext_block.1} parent=59 // pred_check
        %p2390 = pneg %p216
      $region62: #{metanext_block.1} parent=59 // pred_check_branch
        %2392 = sbr.rel (%p2390) target = $region64
      $region63: #{metanext_block.1} parent=59 // pred_region
        %p2393 = scmp.lt.s32.totalorder %s20, 1
        %s2394 = scalar_select %p2393, %s20, 1
        %s2395 = smul.addr %s2394, 8
        %s2396 = smul.addr %s2395, 8
        %s2397 = scalar_lea.vmem %s8, %s2396
      $region64: #{metanext_block.1} parent=59 // pred_fallthru
        _
    $region60: #{metanext_block.1} parent=5 // pred_fallthru
      _
  $region6: #{metanext_block.1} parent=0 // loop_footer
    %s18 = sadd.s32 1, %s14
  $region7: #{metanext_block.1} parent=0 // loop_footer_branch
    %13 = sbr.rel target = $region3
  $region8: #{metanext_block.1} parent=0 // loop_exit
    _

</llo_original>
